<compile_context>
chip_gen: v6e
topology: v6e:2x2x1
jax: 0.10.0
libtpu: 0.0.40
codegen_flags: <defaults>
</compile_context>

<pallas_src>
import jax
import jax.numpy as jnp
from jax import lax
from jax.experimental import pallas as pl
from jax.experimental.pallas import tpu as pltpu

GATE_PAD = 128  # lanes per gate block (vreg-aligned slicing)


def lstm_kernel(x_ref, wih_ref, bias_ref, whh_ref, wlin_ref, blin_ref,
                out_ref, xproj_scr, hseq_scr):
    """Fused LSTM recurrence + Linear head.

    x_ref:     (L, 1)      input sequence (input_size == 1)
    wih_ref:   (1, 4*GP)   fused input->gate weights (pad lanes zero)
    bias_ref:  (1, 4*GP)   fused gate bias b_ih + b_hh (pad lanes zero)
    whh_ref:   (GP, 4*GP)  fused recurrent weights (pad rows / lanes zero)
    wlin_ref:  (GP, 1)     Linear(H, 1) weights (pad rows zero)
    blin_ref:  (1, 1)      Linear bias
    out_ref:   (L, 1)      per-timestep predictions
    xproj_scr: (L, 4*GP)   VMEM scratch: x @ W_ih + bias for all steps
    hseq_scr:  (L, GP)     VMEM scratch: h_t for every step
    """
    L = x_ref.shape[0]
    GP = GATE_PAD

    # Input projection + gate bias for ALL timesteps, hoisted out of the serial
    # recurrence but kept in-kernel.  input_size == 1 -> VPU broadcast multiply.
    # Pad lanes stay exactly zero (weights/bias zero-padded).
    xproj_scr[...] = x_ref[...] * wih_ref[...] + bias_ref[...]

    def step(t, carry):
        h, c = carry                                           # (1, GP), (1, GP)
        # Single fused gate matmul per step + precomputed input projection/bias.
        pre = (jnp.dot(h, whh_ref[...], preferred_element_type=jnp.float32)
               + xproj_scr[pl.ds(t, 1), :])                    # (1, 4*GP)
        i_g = jax.nn.sigmoid(pre[:, 0 * GP:1 * GP])
        f_g = jax.nn.sigmoid(pre[:, 1 * GP:2 * GP])
        g_g = jnp.tanh(pre[:, 2 * GP:3 * GP])
        o_g = jax.nn.sigmoid(pre[:, 3 * GP:4 * GP])
        c_new = f_g * c + i_g * g_g                            # pad lanes stay 0
        h_new = o_g * jnp.tanh(c_new)                          # pad lanes stay 0
        hseq_scr[pl.ds(t, 1), :] = h_new
        return (h_new, c_new)

    h0 = jnp.zeros((1, GP), jnp.float32)
    c0 = jnp.zeros((1, GP), jnp.float32)
    # L is small & static -> fully unroll the serial recurrence.
    lax.fori_loop(0, L, step, (h0, c0), unroll=True)

    # Batched Linear(H, 1) head: one matmul + one store for all timesteps.
    out_ref[...] = (jnp.dot(hseq_scr[...], wlin_ref[...],
                            preferred_element_type=jnp.float32)
                    + blin_ref[...])


def _fuse_gate_params(w_ih, w_hh, bias, w_lin):
    """Concatenate + zero-pad per-gate parameters into 128-lane-aligned blocks."""
    IN = w_ih.shape[1]
    H = w_hh.shape[-1]
    GP = GATE_PAD
    w_ih_cat = jnp.zeros((IN, 4 * GP), jnp.float32)
    w_hh_cat = jnp.zeros((GP, 4 * GP), jnp.float32)
    bias_cat = jnp.zeros((1, 4 * GP), jnp.float32)
    for g in range(4):
        w_ih_cat = w_ih_cat.at[:, g * GP:g * GP + H].set(w_ih[g])
        w_hh_cat = w_hh_cat.at[:H, g * GP:g * GP + H].set(w_hh[g])
        bias_cat = bias_cat.at[:, g * GP:g * GP + H].set(bias[g][None, :])
    w_lin_p = jnp.zeros((GP, 1), jnp.float32).at[:H, :].set(w_lin)
    return w_ih_cat, w_hh_cat, bias_cat, w_lin_p


@jax.jit
def lstm_forward_pallas(x, w_ih, w_hh, bias, w_lin, b_lin):
    """x: (L, 1) f32; w_ih: (4, 1, H); w_hh: (4, H, H); bias: (4, H);
       w_lin: (H, 1); b_lin: (1, 1).  Returns (L, 1) predictions."""
    L, IN = x.shape
    H = w_hh.shape[-1]
    GP = GATE_PAD
    assert IN == 1 and H <= GP

    w_ih_cat, w_hh_cat, bias_cat, w_lin_p = _fuse_gate_params(w_ih, w_hh, bias, w_lin)

    preds = pl.pallas_call(
        lstm_kernel,
        out_shape=jax.ShapeDtypeStruct((L, 1), jnp.float32),
        in_specs=[pl.BlockSpec(memory_space=pltpu.MemorySpace.VMEM)] * 6,
        out_specs=pl.BlockSpec(memory_space=pltpu.MemorySpace.VMEM),
        scratch_shapes=[pltpu.VMEM((L, 4 * GP), jnp.float32),   # x-projection
                        pltpu.VMEM((L, GP), jnp.float32)],      # h_t history
    )(x, w_ih_cat, bias_cat, w_hh_cat, w_lin_p, b_lin)
    return preds


def lstm_forward_ref(x, w_ih, w_hh, bias, w_lin, b_lin):
    """Pure-JAX reference of the same recurrence (unfused weights)."""
    H = w_hh.shape[-1]

    def step(carry, x_t):
        h, c = carry
        x_t = x_t[None, :]                               # (1, IN)
        pre = [x_t @ w_ih[g] + h @ w_hh[g] + bias[g][None, :] for g in range(4)]
        i_g = jax.nn.sigmoid(pre[0])
        f_g = jax.nn.sigmoid(pre[1])
        g_g = jnp.tanh(pre[2])
        o_g = jax.nn.sigmoid(pre[3])
        c_new = f_g * c + i_g * g_g
        h_new = o_g * jnp.tanh(c_new)
        pred = h_new @ w_lin + b_lin                     # (1, 1)
        return (h_new, c_new), pred[0]

    h0 = jnp.zeros((1, H), jnp.float32)
    c0 = jnp.zeros((1, H), jnp.float32)
    _, preds = lax.scan(step, (h0, c0), x)
    return preds


if __name__ == "__main__":
    # Module hyperparameters (from __init__): input_size=1, hidden=50, output=1.
    INPUT_SIZE = 1
    HIDDEN = 50
    OUTPUT = 1
    SEQ_LEN = 8   # small synthetic "stock_df" sequence length

    key = jax.random.PRNGKey(0)
    ks = jax.random.split(key, 7)
    bound = 1.0 / jnp.sqrt(HIDDEN)

    # Deterministic synthetic parameters (PyTorch-style uniform(-1/sqrt(H), 1/sqrt(H))).
    w_ih = jax.random.uniform(ks[0], (4, INPUT_SIZE, HIDDEN), jnp.float32, -bound, bound)
    w_hh = jax.random.uniform(ks[1], (4, HIDDEN, HIDDEN), jnp.float32, -bound, bound)
    b_ih = jax.random.uniform(ks[2], (4, HIDDEN), jnp.float32, -bound, bound)
    b_hh = jax.random.uniform(ks[3], (4, HIDDEN), jnp.float32, -bound, bound)
    bias = b_ih + b_hh
    w_lin = jax.random.uniform(ks[4], (HIDDEN, OUTPUT), jnp.float32, -bound, bound)
    b_lin = jax.random.uniform(ks[5], (1, OUTPUT), jnp.float32, -bound, bound)

    # Synthetic input sequence (the "stock_df" prices), shape (L, input_size).
    x = jax.random.uniform(ks[6], (SEQ_LEN, INPUT_SIZE), jnp.float32, 0.0, 1.0)

    preds = lstm_forward_pallas(x, w_ih, w_hh, bias, w_lin, b_lin)
    preds = jax.block_until_ready(preds)

    # self.predictions = predictions[-1]
    last_prediction = preds[-1]

    # Correctness check against pure-JAX reference.
    preds_ref = lstm_forward_ref(x, w_ih, w_hh, bias, w_lin, b_lin)
    assert jnp.allclose(preds, preds_ref, atol=1e-5, rtol=1e-5), (
        "Pallas LSTM output mismatch vs reference")
    assert last_prediction.shape == (OUTPUT,) or last_prediction.shape == (1,)

    # TODO(synk): processdata()/calculate_loss() (data loading, MinMaxScaler, Adam
    # training loop) are host-side training utilities, not part of the forward pass.
    print("KERNEL_OK")
</pallas_src>

<mosaic_0001>
module attributes {stable_mosaic.version = 11 : i64} {
  func.func @lstm_kernel(%arg0: memref<8x1xf32, #tpu.memory_space<vmem>>, %arg1: memref<1x512xf32, #tpu.memory_space<vmem>>, %arg2: memref<1x512xf32, #tpu.memory_space<vmem>>, %arg3: memref<128x512xf32, #tpu.memory_space<vmem>>, %arg4: memref<128x1xf32, #tpu.memory_space<vmem>>, %arg5: memref<1x1xf32, #tpu.memory_space<vmem>>, %arg6: memref<8x1xf32, #tpu.memory_space<vmem>>, %arg7: memref<8x512xf32, #tpu.memory_space<vmem>>, %arg8: memref<8x128xf32, #tpu.memory_space<vmem>>) attributes {dimension_semantics = [], scalar_prefetch = 0 : i64, scratch_operands = 2 : i64, tpu.core_type = #tpu.core_type<tc>} {
    %c0 = arith.constant 0 : index
    %c0_0 = arith.constant 0 : index
    %0 = vector.load %arg0[%c0, %c0_0] : memref<8x1xf32, #tpu.memory_space<vmem>>, vector<8x1xf32>
    %c0_1 = arith.constant 0 : index
    %c0_2 = arith.constant 0 : index
    %1 = vector.load %arg1[%c0_1, %c0_2] : memref<1x512xf32, #tpu.memory_space<vmem>>, vector<1x512xf32>
    %2 = vector.broadcast %0 : vector<8x1xf32> to vector<8x512xf32>
    %3 = vector.broadcast %1 : vector<1x512xf32> to vector<8x512xf32>
    %4 = arith.mulf %2, %3 : vector<8x512xf32>
    %c0_3 = arith.constant 0 : index
    %c0_4 = arith.constant 0 : index
    %5 = vector.load %arg2[%c0_3, %c0_4] : memref<1x512xf32, #tpu.memory_space<vmem>>, vector<1x512xf32>
    %6 = vector.broadcast %5 : vector<1x512xf32> to vector<8x512xf32>
    %7 = arith.addf %4, %6 : vector<8x512xf32>
    %c0_5 = arith.constant 0 : index
    %c0_6 = arith.constant 0 : index
    %8 = vector.load %arg7[%c0_5, %c0_6] : memref<8x512xf32, #tpu.memory_space<vmem>>, vector<8x512xf32>
    tpu.vector_store %arg7[%c0_5, %c0_6], %7 {strides = array<i32>} : memref<8x512xf32, #tpu.memory_space<vmem>>, vector<8x512xf32>,
    %cst = arith.constant 0.000000e+00 : f32
    %9 = vector.broadcast %cst : f32 to vector<1x128xf32>
    %cst_7 = arith.constant 0.000000e+00 : f32
    %10 = vector.broadcast %cst_7 : f32 to vector<1x128xf32>
    %c0_i32 = arith.constant 0 : i32
    %c0_8 = arith.constant 0 : index
    %c0_9 = arith.constant 0 : index
    %11 = vector.load %arg3[%c0_8, %c0_9] : memref<128x512xf32, #tpu.memory_space<vmem>>, vector<128x512xf32>
    %cst_10 = arith.constant dense<0.000000e+00> : vector<1x512xf32>
    %12 = tpu.matmul %9, %11, %cst_10 {dimension_numbers = #tpu.dot_dimension_numbers<[1], [0], [0], [1], [0, 0, 1, 1], [], []>} : vector<1x128xf32>, vector<128x512xf32>, vector<1x512xf32> -> vector<1x512xf32>
    %13 = arith.index_cast %c0_i32 : i32 to index
    %c0_11 = arith.constant 0 : index
    %14 = vector.load %arg7[%13, %c0_11] : memref<8x512xf32, #tpu.memory_space<vmem>>, vector<1x512xf32>
    %15 = arith.addf %12, %14 : vector<1x512xf32>
    %16 = vector.extract_strided_slice %15 {offsets = [0, 0], sizes = [1, 128], strides = [1, 1]} : vector<1x512xf32> to vector<1x128xf32>
    %17 = arith.negf %16 : vector<1x128xf32>
    %18 = math.exp %17 : vector<1x128xf32>
    %cst_12 = arith.constant 1.000000e+00 : f32
    %19 = vector.broadcast %cst_12 : f32 to vector<1x128xf32>
    %20 = arith.addf %19, %18 : vector<1x128xf32>
    %21 = arith.divf %19, %20 : vector<1x128xf32>
    %22 = vector.extract_strided_slice %15 {offsets = [0, 128], sizes = [1, 128], strides = [1, 1]} : vector<1x512xf32> to vector<1x128xf32>
    %23 = arith.negf %22 : vector<1x128xf32>
    %24 = math.exp %23 : vector<1x128xf32>
    %cst_13 = arith.constant 1.000000e+00 : f32
    %25 = vector.broadcast %cst_13 : f32 to vector<1x128xf32>
    %26 = arith.addf %25, %24 : vector<1x128xf32>
    %27 = arith.divf %25, %26 : vector<1x128xf32>
    %28 = vector.extract_strided_slice %15 {offsets = [0, 256], sizes = [1, 128], strides = [1, 1]} : vector<1x512xf32> to vector<1x128xf32>
    %29 = math.tanh %28 : vector<1x128xf32>
    %30 = vector.extract_strided_slice %15 {offsets = [0, 384], sizes = [1, 128], strides = [1, 1]} : vector<1x512xf32> to vector<1x128xf32>
    %31 = arith.negf %30 : vector<1x128xf32>
    %32 = math.exp %31 : vector<1x128xf32>
    %cst_14 = arith.constant 1.000000e+00 : f32
    %33 = vector.broadcast %cst_14 : f32 to vector<1x128xf32>
    %34 = arith.addf %33, %32 : vector<1x128xf32>
    %35 = arith.divf %33, %34 : vector<1x128xf32>
    %36 = arith.mulf %27, %10 : vector<1x128xf32>
    %37 = arith.mulf %21, %29 : vector<1x128xf32>
    %38 = arith.addf %36, %37 : vector<1x128xf32>
    %39 = math.tanh %38 : vector<1x128xf32>
    %40 = arith.mulf %35, %39 : vector<1x128xf32>
    %41 = arith.index_cast %c0_i32 : i32 to index
    %c0_15 = arith.constant 0 : index
    %42 = vector.load %arg8[%41, %c0_15] : memref<8x128xf32, #tpu.memory_space<vmem>>, vector<1x128xf32>
    tpu.vector_store %arg8[%41, %c0_15], %40 {strides = array<i32>} : memref<8x128xf32, #tpu.memory_space<vmem>>, vector<1x128xf32>,
    %c1_i32 = arith.constant 1 : i32
    %c0_16 = arith.constant 0 : index
    %c0_17 = arith.constant 0 : index
    %43 = vector.load %arg3[%c0_16, %c0_17] : memref<128x512xf32, #tpu.memory_space<vmem>>, vector<128x512xf32>
    %cst_18 = arith.constant dense<0.000000e+00> : vector<1x512xf32>
    %44 = tpu.matmul %40, %43, %cst_18 {dimension_numbers = #tpu.dot_dimension_numbers<[1], [0], [0], [1], [0, 0, 1, 1], [], []>} : vector<1x128xf32>, vector<128x512xf32>, vector<1x512xf32> -> vector<1x512xf32>
    %45 = arith.index_cast %c1_i32 : i32 to index
    %c0_19 = arith.constant 0 : index
    %46 = vector.load %arg7[%45, %c0_19] : memref<8x512xf32, #tpu.memory_space<vmem>>, vector<1x512xf32>
    %47 = arith.addf %44, %46 : vector<1x512xf32>
    %48 = vector.extract_strided_slice %47 {offsets = [0, 0], sizes = [1, 128], strides = [1, 1]} : vector<1x512xf32> to vector<1x128xf32>
    %49 = arith.negf %48 : vector<1x128xf32>
    %50 = math.exp %49 : vector<1x128xf32>
    %cst_20 = arith.constant 1.000000e+00 : f32
    %51 = vector.broadcast %cst_20 : f32 to vector<1x128xf32>
    %52 = arith.addf %51, %50 : vector<1x128xf32>
    %53 = arith.divf %51, %52 : vector<1x128xf32>
    %54 = vector.extract_strided_slice %47 {offsets = [0, 128], sizes = [1, 128], strides = [1, 1]} : vector<1x512xf32> to vector<1x128xf32>
    %55 = arith.negf %54 : vector<1x128xf32>
    %56 = math.exp %55 : vector<1x128xf32>
    %cst_21 = arith.constant 1.000000e+00 : f32
    %57 = vector.broadcast %cst_21 : f32 to vector<1x128xf32>
    %58 = arith.addf %57, %56 : vector<1x128xf32>
    %59 = arith.divf %57, %58 : vector<1x128xf32>
    %60 = vector.extract_strided_slice %47 {offsets = [0, 256], sizes = [1, 128], strides = [1, 1]} : vector<1x512xf32> to vector<1x128xf32>
    %61 = math.tanh %60 : vector<1x128xf32>
    %62 = vector.extract_strided_slice %47 {offsets = [0, 384], sizes = [1, 128], strides = [1, 1]} : vector<1x512xf32> to vector<1x128xf32>
    %63 = arith.negf %62 : vector<1x128xf32>
    %64 = math.exp %63 : vector<1x128xf32>
    %cst_22 = arith.constant 1.000000e+00 : f32
    %65 = vector.broadcast %cst_22 : f32 to vector<1x128xf32>
    %66 = arith.addf %65, %64 : vector<1x128xf32>
    %67 = arith.divf %65, %66 : vector<1x128xf32>
    %68 = arith.mulf %59, %38 : vector<1x128xf32>
    %69 = arith.mulf %53, %61 : vector<1x128xf32>
    %70 = arith.addf %68, %69 : vector<1x128xf32>
    %71 = math.tanh %70 : vector<1x128xf32>
    %72 = arith.mulf %67, %71 : vector<1x128xf32>
    %73 = arith.index_cast %c1_i32 : i32 to index
    %c0_23 = arith.constant 0 : index
    %74 = vector.load %arg8[%73, %c0_23] : memref<8x128xf32, #tpu.memory_space<vmem>>, vector<1x128xf32>
    tpu.vector_store %arg8[%73, %c0_23], %72 {strides = array<i32>} : memref<8x128xf32, #tpu.memory_space<vmem>>, vector<1x128xf32>,
    %c2_i32 = arith.constant 2 : i32
    %c0_24 = arith.constant 0 : index
    %c0_25 = arith.constant 0 : index
    %75 = vector.load %arg3[%c0_24, %c0_25] : memref<128x512xf32, #tpu.memory_space<vmem>>, vector<128x512xf32>
    %cst_26 = arith.constant dense<0.000000e+00> : vector<1x512xf32>
    %76 = tpu.matmul %72, %75, %cst_26 {dimension_numbers = #tpu.dot_dimension_numbers<[1], [0], [0], [1], [0, 0, 1, 1], [], []>} : vector<1x128xf32>, vector<128x512xf32>, vector<1x512xf32> -> vector<1x512xf32>
    %77 = arith.index_cast %c2_i32 : i32 to index
    %c0_27 = arith.constant 0 : index
    %78 = vector.load %arg7[%77, %c0_27] : memref<8x512xf32, #tpu.memory_space<vmem>>, vector<1x512xf32>
    %79 = arith.addf %76, %78 : vector<1x512xf32>
    %80 = vector.extract_strided_slice %79 {offsets = [0, 0], sizes = [1, 128], strides = [1, 1]} : vector<1x512xf32> to vector<1x128xf32>
    %81 = arith.negf %80 : vector<1x128xf32>
    %82 = math.exp %81 : vector<1x128xf32>
    %cst_28 = arith.constant 1.000000e+00 : f32
    %83 = vector.broadcast %cst_28 : f32 to vector<1x128xf32>
    %84 = arith.addf %83, %82 : vector<1x128xf32>
    %85 = arith.divf %83, %84 : vector<1x128xf32>
    %86 = vector.extract_strided_slice %79 {offsets = [0, 128], sizes = [1, 128], strides = [1, 1]} : vector<1x512xf32> to vector<1x128xf32>
    %87 = arith.negf %86 : vector<1x128xf32>
    %88 = math.exp %87 : vector<1x128xf32>
    %cst_29 = arith.constant 1.000000e+00 : f32
    %89 = vector.broadcast %cst_29 : f32 to vector<1x128xf32>
    %90 = arith.addf %89, %88 : vector<1x128xf32>
    %91 = arith.divf %89, %90 : vector<1x128xf32>
    %92 = vector.extract_strided_slice %79 {offsets = [0, 256], sizes = [1, 128], strides = [1, 1]} : vector<1x512xf32> to vector<1x128xf32>
    %93 = math.tanh %92 : vector<1x128xf32>
    %94 = vector.extract_strided_slice %79 {offsets = [0, 384], sizes = [1, 128], strides = [1, 1]} : vector<1x512xf32> to vector<1x128xf32>
    %95 = arith.negf %94 : vector<1x128xf32>
    %96 = math.exp %95 : vector<1x128xf32>
    %cst_30 = arith.constant 1.000000e+00 : f32
    %97 = vector.broadcast %cst_30 : f32 to vector<1x128xf32>
    %98 = arith.addf %97, %96 : vector<1x128xf32>
    %99 = arith.divf %97, %98 : vector<1x128xf32>
    %100 = arith.mulf %91, %70 : vector<1x128xf32>
    %101 = arith.mulf %85, %93 : vector<1x128xf32>
    %102 = arith.addf %100, %101 : vector<1x128xf32>
    %103 = math.tanh %102 : vector<1x128xf32>
    %104 = arith.mulf %99, %103 : vector<1x128xf32>
    %105 = arith.index_cast %c2_i32 : i32 to index
    %c0_31 = arith.constant 0 : index
    %106 = vector.load %arg8[%105, %c0_31] : memref<8x128xf32, #tpu.memory_space<vmem>>, vector<1x128xf32>
    tpu.vector_store %arg8[%105, %c0_31], %104 {strides = array<i32>} : memref<8x128xf32, #tpu.memory_space<vmem>>, vector<1x128xf32>,
    %c3_i32 = arith.constant 3 : i32
    %c0_32 = arith.constant 0 : index
    %c0_33 = arith.constant 0 : index
    %107 = vector.load %arg3[%c0_32, %c0_33] : memref<128x512xf32, #tpu.memory_space<vmem>>, vector<128x512xf32>
    %cst_34 = arith.constant dense<0.000000e+00> : vector<1x512xf32>
    %108 = tpu.matmul %104, %107, %cst_34 {dimension_numbers = #tpu.dot_dimension_numbers<[1], [0], [0], [1], [0, 0, 1, 1], [], []>} : vector<1x128xf32>, vector<128x512xf32>, vector<1x512xf32> -> vector<1x512xf32>
    %109 = arith.index_cast %c3_i32 : i32 to index
    %c0_35 = arith.constant 0 : index
    %110 = vector.load %arg7[%109, %c0_35] : memref<8x512xf32, #tpu.memory_space<vmem>>, vector<1x512xf32>
    %111 = arith.addf %108, %110 : vector<1x512xf32>
    %112 = vector.extract_strided_slice %111 {offsets = [0, 0], sizes = [1, 128], strides = [1, 1]} : vector<1x512xf32> to vector<1x128xf32>
    %113 = arith.negf %112 : vector<1x128xf32>
    %114 = math.exp %113 : vector<1x128xf32>
    %cst_36 = arith.constant 1.000000e+00 : f32
    %115 = vector.broadcast %cst_36 : f32 to vector<1x128xf32>
    %116 = arith.addf %115, %114 : vector<1x128xf32>
    %117 = arith.divf %115, %116 : vector<1x128xf32>
    %118 = vector.extract_strided_slice %111 {offsets = [0, 128], sizes = [1, 128], strides = [1, 1]} : vector<1x512xf32> to vector<1x128xf32>
    %119 = arith.negf %118 : vector<1x128xf32>
    %120 = math.exp %119 : vector<1x128xf32>
    %cst_37 = arith.constant 1.000000e+00 : f32
    %121 = vector.broadcast %cst_37 : f32 to vector<1x128xf32>
    %122 = arith.addf %121, %120 : vector<1x128xf32>
    %123 = arith.divf %121, %122 : vector<1x128xf32>
    %124 = vector.extract_strided_slice %111 {offsets = [0, 256], sizes = [1, 128], strides = [1, 1]} : vector<1x512xf32> to vector<1x128xf32>
    %125 = math.tanh %124 : vector<1x128xf32>
    %126 = vector.extract_strided_slice %111 {offsets = [0, 384], sizes = [1, 128], strides = [1, 1]} : vector<1x512xf32> to vector<1x128xf32>
    %127 = arith.negf %126 : vector<1x128xf32>
    %128 = math.exp %127 : vector<1x128xf32>
    %cst_38 = arith.constant 1.000000e+00 : f32
    %129 = vector.broadcast %cst_38 : f32 to vector<1x128xf32>
    %130 = arith.addf %129, %128 : vector<1x128xf32>
    %131 = arith.divf %129, %130 : vector<1x128xf32>
    %132 = arith.mulf %123, %102 : vector<1x128xf32>
    %133 = arith.mulf %117, %125 : vector<1x128xf32>
    %134 = arith.addf %132, %133 : vector<1x128xf32>
    %135 = math.tanh %134 : vector<1x128xf32>
    %136 = arith.mulf %131, %135 : vector<1x128xf32>
    %137 = arith.index_cast %c3_i32 : i32 to index
    %c0_39 = arith.constant 0 : index
    %138 = vector.load %arg8[%137, %c0_39] : memref<8x128xf32, #tpu.memory_space<vmem>>, vector<1x128xf32>
    tpu.vector_store %arg8[%137, %c0_39], %136 {strides = array<i32>} : memref<8x128xf32, #tpu.memory_space<vmem>>, vector<1x128xf32>,
    %c4_i32 = arith.constant 4 : i32
    %c0_40 = arith.constant 0 : index
    %c0_41 = arith.constant 0 : index
    %139 = vector.load %arg3[%c0_40, %c0_41] : memref<128x512xf32, #tpu.memory_space<vmem>>, vector<128x512xf32>
    %cst_42 = arith.constant dense<0.000000e+00> : vector<1x512xf32>
    %140 = tpu.matmul %136, %139, %cst_42 {dimension_numbers = #tpu.dot_dimension_numbers<[1], [0], [0], [1], [0, 0, 1, 1], [], []>} : vector<1x128xf32>, vector<128x512xf32>, vector<1x512xf32> -> vector<1x512xf32>
    %141 = arith.index_cast %c4_i32 : i32 to index
    %c0_43 = arith.constant 0 : index
    %142 = vector.load %arg7[%141, %c0_43] : memref<8x512xf32, #tpu.memory_space<vmem>>, vector<1x512xf32>
    %143 = arith.addf %140, %142 : vector<1x512xf32>
    %144 = vector.extract_strided_slice %143 {offsets = [0, 0], sizes = [1, 128], strides = [1, 1]} : vector<1x512xf32> to vector<1x128xf32>
    %145 = arith.negf %144 : vector<1x128xf32>
    %146 = math.exp %145 : vector<1x128xf32>
    %cst_44 = arith.constant 1.000000e+00 : f32
    %147 = vector.broadcast %cst_44 : f32 to vector<1x128xf32>
    %148 = arith.addf %147, %146 : vector<1x128xf32>
    %149 = arith.divf %147, %148 : vector<1x128xf32>
    %150 = vector.extract_strided_slice %143 {offsets = [0, 128], sizes = [1, 128], strides = [1, 1]} : vector<1x512xf32> to vector<1x128xf32>
    %151 = arith.negf %150 : vector<1x128xf32>
    %152 = math.exp %151 : vector<1x128xf32>
    %cst_45 = arith.constant 1.000000e+00 : f32
    %153 = vector.broadcast %cst_45 : f32 to vector<1x128xf32>
    %154 = arith.addf %153, %152 : vector<1x128xf32>
    %155 = arith.divf %153, %154 : vector<1x128xf32>
    %156 = vector.extract_strided_slice %143 {offsets = [0, 256], sizes = [1, 128], strides = [1, 1]} : vector<1x512xf32> to vector<1x128xf32>
    %157 = math.tanh %156 : vector<1x128xf32>
    %158 = vector.extract_strided_slice %143 {offsets = [0, 384], sizes = [1, 128], strides = [1, 1]} : vector<1x512xf32> to vector<1x128xf32>
    %159 = arith.negf %158 : vector<1x128xf32>
    %160 = math.exp %159 : vector<1x128xf32>
    %cst_46 = arith.constant 1.000000e+00 : f32
    %161 = vector.broadcast %cst_46 : f32 to vector<1x128xf32>
    %162 = arith.addf %161, %160 : vector<1x128xf32>
    %163 = arith.divf %161, %162 : vector<1x128xf32>
    %164 = arith.mulf %155, %134 : vector<1x128xf32>
    %165 = arith.mulf %149, %157 : vector<1x128xf32>
    %166 = arith.addf %164, %165 : vector<1x128xf32>
    %167 = math.tanh %166 : vector<1x128xf32>
    %168 = arith.mulf %163, %167 : vector<1x128xf32>
    %169 = arith.index_cast %c4_i32 : i32 to index
    %c0_47 = arith.constant 0 : index
    %170 = vector.load %arg8[%169, %c0_47] : memref<8x128xf32, #tpu.memory_space<vmem>>, vector<1x128xf32>
    tpu.vector_store %arg8[%169, %c0_47], %168 {strides = array<i32>} : memref<8x128xf32, #tpu.memory_space<vmem>>, vector<1x128xf32>,
    %c5_i32 = arith.constant 5 : i32
    %c0_48 = arith.constant 0 : index
    %c0_49 = arith.constant 0 : index
    %171 = vector.load %arg3[%c0_48, %c0_49] : memref<128x512xf32, #tpu.memory_space<vmem>>, vector<128x512xf32>
    %cst_50 = arith.constant dense<0.000000e+00> : vector<1x512xf32>
    %172 = tpu.matmul %168, %171, %cst_50 {dimension_numbers = #tpu.dot_dimension_numbers<[1], [0], [0], [1], [0, 0, 1, 1], [], []>} : vector<1x128xf32>, vector<128x512xf32>, vector<1x512xf32> -> vector<1x512xf32>
    %173 = arith.index_cast %c5_i32 : i32 to index
    %c0_51 = arith.constant 0 : index
    %174 = vector.load %arg7[%173, %c0_51] : memref<8x512xf32, #tpu.memory_space<vmem>>, vector<1x512xf32>
    %175 = arith.addf %172, %174 : vector<1x512xf32>
    %176 = vector.extract_strided_slice %175 {offsets = [0, 0], sizes = [1, 128], strides = [1, 1]} : vector<1x512xf32> to vector<1x128xf32>
    %177 = arith.negf %176 : vector<1x128xf32>
    %178 = math.exp %177 : vector<1x128xf32>
    %cst_52 = arith.constant 1.000000e+00 : f32
    %179 = vector.broadcast %cst_52 : f32 to vector<1x128xf32>
    %180 = arith.addf %179, %178 : vector<1x128xf32>
    %181 = arith.divf %179, %180 : vector<1x128xf32>
    %182 = vector.extract_strided_slice %175 {offsets = [0, 128], sizes = [1, 128], strides = [1, 1]} : vector<1x512xf32> to vector<1x128xf32>
    %183 = arith.negf %182 : vector<1x128xf32>
    %184 = math.exp %183 : vector<1x128xf32>
    %cst_53 = arith.constant 1.000000e+00 : f32
    %185 = vector.broadcast %cst_53 : f32 to vector<1x128xf32>
    %186 = arith.addf %185, %184 : vector<1x128xf32>
    %187 = arith.divf %185, %186 : vector<1x128xf32>
    %188 = vector.extract_strided_slice %175 {offsets = [0, 256], sizes = [1, 128], strides = [1, 1]} : vector<1x512xf32> to vector<1x128xf32>
    %189 = math.tanh %188 : vector<1x128xf32>
    %190 = vector.extract_strided_slice %175 {offsets = [0, 384], sizes = [1, 128], strides = [1, 1]} : vector<1x512xf32> to vector<1x128xf32>
    %191 = arith.negf %190 : vector<1x128xf32>
    %192 = math.exp %191 : vector<1x128xf32>
    %cst_54 = arith.constant 1.000000e+00 : f32
    %193 = vector.broadcast %cst_54 : f32 to vector<1x128xf32>
    %194 = arith.addf %193, %192 : vector<1x128xf32>
    %195 = arith.divf %193, %194 : vector<1x128xf32>
    %196 = arith.mulf %187, %166 : vector<1x128xf32>
    %197 = arith.mulf %181, %189 : vector<1x128xf32>
    %198 = arith.addf %196, %197 : vector<1x128xf32>
    %199 = math.tanh %198 : vector<1x128xf32>
    %200 = arith.mulf %195, %199 : vector<1x128xf32>
    %201 = arith.index_cast %c5_i32 : i32 to index
    %c0_55 = arith.constant 0 : index
    %202 = vector.load %arg8[%201, %c0_55] : memref<8x128xf32, #tpu.memory_space<vmem>>, vector<1x128xf32>
    tpu.vector_store %arg8[%201, %c0_55], %200 {strides = array<i32>} : memref<8x128xf32, #tpu.memory_space<vmem>>, vector<1x128xf32>,
    %c6_i32 = arith.constant 6 : i32
    %c0_56 = arith.constant 0 : index
    %c0_57 = arith.constant 0 : index
    %203 = vector.load %arg3[%c0_56, %c0_57] : memref<128x512xf32, #tpu.memory_space<vmem>>, vector<128x512xf32>
    %cst_58 = arith.constant dense<0.000000e+00> : vector<1x512xf32>
    %204 = tpu.matmul %200, %203, %cst_58 {dimension_numbers = #tpu.dot_dimension_numbers<[1], [0], [0], [1], [0, 0, 1, 1], [], []>} : vector<1x128xf32>, vector<128x512xf32>, vector<1x512xf32> -> vector<1x512xf32>
    %205 = arith.index_cast %c6_i32 : i32 to index
    %c0_59 = arith.constant 0 : index
    %206 = vector.load %arg7[%205, %c0_59] : memref<8x512xf32, #tpu.memory_space<vmem>>, vector<1x512xf32>
    %207 = arith.addf %204, %206 : vector<1x512xf32>
    %208 = vector.extract_strided_slice %207 {offsets = [0, 0], sizes = [1, 128], strides = [1, 1]} : vector<1x512xf32> to vector<1x128xf32>
    %209 = arith.negf %208 : vector<1x128xf32>
    %210 = math.exp %209 : vector<1x128xf32>
    %cst_60 = arith.constant 1.000000e+00 : f32
    %211 = vector.broadcast %cst_60 : f32 to vector<1x128xf32>
    %212 = arith.addf %211, %210 : vector<1x128xf32>
    %213 = arith.divf %211, %212 : vector<1x128xf32>
    %214 = vector.extract_strided_slice %207 {offsets = [0, 128], sizes = [1, 128], strides = [1, 1]} : vector<1x512xf32> to vector<1x128xf32>
    %215 = arith.negf %214 : vector<1x128xf32>
    %216 = math.exp %215 : vector<1x128xf32>
    %cst_61 = arith.constant 1.000000e+00 : f32
    %217 = vector.broadcast %cst_61 : f32 to vector<1x128xf32>
    %218 = arith.addf %217, %216 : vector<1x128xf32>
    %219 = arith.divf %217, %218 : vector<1x128xf32>
    %220 = vector.extract_strided_slice %207 {offsets = [0, 256], sizes = [1, 128], strides = [1, 1]} : vector<1x512xf32> to vector<1x128xf32>
    %221 = math.tanh %220 : vector<1x128xf32>
    %222 = vector.extract_strided_slice %207 {offsets = [0, 384], sizes = [1, 128], strides = [1, 1]} : vector<1x512xf32> to vector<1x128xf32>
    %223 = arith.negf %222 : vector<1x128xf32>
    %224 = math.exp %223 : vector<1x128xf32>
    %cst_62 = arith.constant 1.000000e+00 : f32
    %225 = vector.broadcast %cst_62 : f32 to vector<1x128xf32>
    %226 = arith.addf %225, %224 : vector<1x128xf32>
    %227 = arith.divf %225, %226 : vector<1x128xf32>
    %228 = arith.mulf %219, %198 : vector<1x128xf32>
    %229 = arith.mulf %213, %221 : vector<1x128xf32>
    %230 = arith.addf %228, %229 : vector<1x128xf32>
    %231 = math.tanh %230 : vector<1x128xf32>
    %232 = arith.mulf %227, %231 : vector<1x128xf32>
    %233 = arith.index_cast %c6_i32 : i32 to index
    %c0_63 = arith.constant 0 : index
    %234 = vector.load %arg8[%233, %c0_63] : memref<8x128xf32, #tpu.memory_space<vmem>>, vector<1x128xf32>
    tpu.vector_store %arg8[%233, %c0_63], %232 {strides = array<i32>} : memref<8x128xf32, #tpu.memory_space<vmem>>, vector<1x128xf32>,
    %c7_i32 = arith.constant 7 : i32
    %c0_64 = arith.constant 0 : index
    %c0_65 = arith.constant 0 : index
    %235 = vector.load %arg3[%c0_64, %c0_65] : memref<128x512xf32, #tpu.memory_space<vmem>>, vector<128x512xf32>
    %cst_66 = arith.constant dense<0.000000e+00> : vector<1x512xf32>
    %236 = tpu.matmul %232, %235, %cst_66 {dimension_numbers = #tpu.dot_dimension_numbers<[1], [0], [0], [1], [0, 0, 1, 1], [], []>} : vector<1x128xf32>, vector<128x512xf32>, vector<1x512xf32> -> vector<1x512xf32>
    %237 = arith.index_cast %c7_i32 : i32 to index
    %c0_67 = arith.constant 0 : index
    %238 = vector.load %arg7[%237, %c0_67] : memref<8x512xf32, #tpu.memory_space<vmem>>, vector<1x512xf32>
    %239 = arith.addf %236, %238 : vector<1x512xf32>
    %240 = vector.extract_strided_slice %239 {offsets = [0, 0], sizes = [1, 128], strides = [1, 1]} : vector<1x512xf32> to vector<1x128xf32>
    %241 = arith.negf %240 : vector<1x128xf32>
    %242 = math.exp %241 : vector<1x128xf32>
    %cst_68 = arith.constant 1.000000e+00 : f32
    %243 = vector.broadcast %cst_68 : f32 to vector<1x128xf32>
    %244 = arith.addf %243, %242 : vector<1x128xf32>
    %245 = arith.divf %243, %244 : vector<1x128xf32>
    %246 = vector.extract_strided_slice %239 {offsets = [0, 128], sizes = [1, 128], strides = [1, 1]} : vector<1x512xf32> to vector<1x128xf32>
    %247 = arith.negf %246 : vector<1x128xf32>
    %248 = math.exp %247 : vector<1x128xf32>
    %cst_69 = arith.constant 1.000000e+00 : f32
    %249 = vector.broadcast %cst_69 : f32 to vector<1x128xf32>
    %250 = arith.addf %249, %248 : vector<1x128xf32>
    %251 = arith.divf %249, %250 : vector<1x128xf32>
    %252 = vector.extract_strided_slice %239 {offsets = [0, 256], sizes = [1, 128], strides = [1, 1]} : vector<1x512xf32> to vector<1x128xf32>
    %253 = math.tanh %252 : vector<1x128xf32>
    %254 = vector.extract_strided_slice %239 {offsets = [0, 384], sizes = [1, 128], strides = [1, 1]} : vector<1x512xf32> to vector<1x128xf32>
    %255 = arith.negf %254 : vector<1x128xf32>
    %256 = math.exp %255 : vector<1x128xf32>
    %cst_70 = arith.constant 1.000000e+00 : f32
    %257 = vector.broadcast %cst_70 : f32 to vector<1x128xf32>
    %258 = arith.addf %257, %256 : vector<1x128xf32>
    %259 = arith.divf %257, %258 : vector<1x128xf32>
    %260 = arith.mulf %251, %230 : vector<1x128xf32>
    %261 = arith.mulf %245, %253 : vector<1x128xf32>
    %262 = arith.addf %260, %261 : vector<1x128xf32>
    %263 = math.tanh %262 : vector<1x128xf32>
    %264 = arith.mulf %259, %263 : vector<1x128xf32>
    %265 = arith.index_cast %c7_i32 : i32 to index
    %c0_71 = arith.constant 0 : index
    %266 = vector.load %arg8[%265, %c0_71] : memref<8x128xf32, #tpu.memory_space<vmem>>, vector<1x128xf32>
    tpu.vector_store %arg8[%265, %c0_71], %264 {strides = array<i32>} : memref<8x128xf32, #tpu.memory_space<vmem>>, vector<1x128xf32>,
    %c8_i32 = arith.constant 8 : i32
    %c0_72 = arith.constant 0 : index
    %c0_73 = arith.constant 0 : index
    %267 = vector.load %arg8[%c0_72, %c0_73] : memref<8x128xf32, #tpu.memory_space<vmem>>, vector<8x128xf32>
    %c0_74 = arith.constant 0 : index
    %c0_75 = arith.constant 0 : index
    %268 = vector.load %arg4[%c0_74, %c0_75] : memref<128x1xf32, #tpu.memory_space<vmem>>, vector<128x1xf32>
    %cst_76 = arith.constant dense<0.000000e+00> : vector<8x1xf32>
    %269 = tpu.matmul %267, %268, %cst_76 {dimension_numbers = #tpu.dot_dimension_numbers<[1], [0], [0], [1], [0, 0, 1, 1], [], []>} : vector<8x128xf32>, vector<128x1xf32>, vector<8x1xf32> -> vector<8x1xf32>
    %c0_77 = arith.constant 0 : index
    %c0_78 = arith.constant 0 : index
    %270 = vector.load %arg5[%c0_77, %c0_78] : memref<1x1xf32, #tpu.memory_space<vmem>>, vector<1x1xf32>
    %271 = vector.broadcast %270 : vector<1x1xf32> to vector<8x1xf32>
    %272 = arith.addf %269, %271 : vector<8x1xf32>
    %c0_79 = arith.constant 0 : index
    %c0_80 = arith.constant 0 : index
    %273 = vector.load %arg6[%c0_79, %c0_80] : memref<8x1xf32, #tpu.memory_space<vmem>>, vector<8x1xf32>
    tpu.vector_store %arg6[%c0_79, %c0_80], %272 {strides = array<i32>} : memref<8x1xf32, #tpu.memory_space<vmem>>, vector<8x1xf32>,
    return
  }
}

</mosaic_0001>

<llo_original>
// kernel: lstm_forward_pallas.1
$region0: #{lstm_forward_pallas.1}
  #allocation0 [shape = 'u32[]', space=smem, size = 0x4, offset = 0x4, fixed_abs, tag = 'smem constant byte address 0x4 - core index']
  #allocation1 [shape = 'u32[144,128]{1,0:T(1,128)}', space=vmem, size = 0x12000, scoped, tag = 'internal scratch']
  #allocation2 [shape = 'f32[8,512]{1,0:T(8,128)}', space=vmem, size = 0x4000, scoped, tag = 'scratch operand']
  #allocation3 [shape = 'f32[8,128]{1,0:T(8,128)}', space=vmem, size = 0x1000, scoped, tag = 'scratch operand']
  #allocation4 [shape = 'f32[1,1]{1,0:T(1,128)S(1)}', space=vmem, size = 0x200, scoped, tag = 'scoped memory for lstm_forward_pallas.1']
  %s0 = inlined_call_operand.vmem [shape: f32[8,1], index: 0, kind: input, shape index: {}]
  %s1 = inlined_call_operand.vmem [shape: f32[1,512], index: 1, kind: input, shape index: {}]
  %s2 = inlined_call_operand.vmem [shape: f32[1,512], index: 2, kind: input, shape index: {}]
  %s3 = inlined_call_operand.vmem [shape: f32[128,512], index: 3, kind: input, shape index: {}]
  %s4 = inlined_call_operand.vmem [shape: f32[128,1], index: 4, kind: input, shape index: {}]
  %s5 = inlined_call_operand.<no memory space> [shape: f32[1,1], index: 5, kind: input, shape index: {}]
  %s6 = inlined_call_operand.vmem [shape: f32[8,1], index: 6, kind: output, shape index: {}]
  %s7 = sld [smem:[#allocation0]]
  $region34: #{lstm_forward_pallas.1} parent=0
    _
  %s9 = ssub.s32 1, %s7
  %s10 = scalar_select 0, %s9, %s7
  %v11 = vstv %s5
  %12 = vst [vmem:[#allocation4] sm:$0x1] %v11
  // Predicated region
  $region2: #{lstm_forward_pallas.1} parent=0 // pred_check
    _
  $region3: #{lstm_forward_pallas.1} parent=0 // pred_check_branch
    %14 = sbr.rel (0) target = $region5
  $region4: #{lstm_forward_pallas.1} parent=0 // pred_region
    _
  $region5: #{lstm_forward_pallas.1} parent=0 // pred_fallthru
    _
  // Predicated region
  $region6: #{lstm_forward_pallas.1} parent=0 // pred_check
    _
  $region7: #{lstm_forward_pallas.1} parent=0 // pred_check_branch
    %16 = sbr.rel (0) target = $region9
  $region8: #{lstm_forward_pallas.1} parent=0 // pred_region
    _
  $region9: #{lstm_forward_pallas.1} parent=0 // pred_fallthru
    _
  // Predicated region
  $region10: #{lstm_forward_pallas.1} parent=0 // pred_check
    _
  $region11: #{lstm_forward_pallas.1} parent=0 // pred_check_branch
    %18 = sbr.rel (0) target = $region13
  $region12: #{lstm_forward_pallas.1} parent=0 // pred_region
    _
  $region13: #{lstm_forward_pallas.1} parent=0 // pred_fallthru
    _
  // Predicated region
  $region14: #{lstm_forward_pallas.1} parent=0 // pred_check
    _
  $region15: #{lstm_forward_pallas.1} parent=0 // pred_check_branch
    %20 = sbr.rel (0) target = $region17
  $region16: #{lstm_forward_pallas.1} parent=0 // pred_region
    _
  $region17: #{lstm_forward_pallas.1} parent=0 // pred_fallthru
    _
  // Predicated region
  $region18: #{lstm_forward_pallas.1} parent=0 // pred_check
    _
  $region19: #{lstm_forward_pallas.1} parent=0 // pred_check_branch
    %22 = sbr.rel (0) target = $region21
  $region20: #{lstm_forward_pallas.1} parent=0 // pred_region
    _
  $region21: #{lstm_forward_pallas.1} parent=0 // pred_fallthru
    _
  // Predicated region
  $region22: #{lstm_forward_pallas.1} parent=0 // pred_check
    _
  $region23: #{lstm_forward_pallas.1} parent=0 // pred_check_branch
    %24 = sbr.rel (0) target = $region25
  $region24: #{lstm_forward_pallas.1} parent=0 // pred_region
    _
  $region25: #{lstm_forward_pallas.1} parent=0 // pred_fallthru
    _
  %v25 = vld [vmem:[%s0] sm:$0xff]
  %v26 = vld [vmem:[%s1] sm:$0xf]
  %28 = vset.pattern.permute.xlu0 0
  %29 = vperm.xlu0 %28, %v25
  %v30 = vpop.permute.xlu0 %29
  %v33 = vlaneseq
  %v34 = vshrl.u32 %v33, 7
  %v35 = vsub.s32 0, %v34
  %v36 = vrot.slane %v26, %v35
  %v37 = vlaneseq
  %v38 = vshrl.u32 %v37, 7
  %v39 = vsub.s32 1, %v38
  %v40 = vrot.slane %v26, %v39
  %v41 = vlaneseq
  %v42 = vshrl.u32 %v41, 7
  %v43 = vsub.s32 2, %v42
  %v44 = vrot.slane %v26, %v43
  %v45 = vlaneseq
  %v46 = vshrl.u32 %v45, 7
  %v47 = vsub.s32 3, %v46
  %v48 = vrot.slane %v26, %v47
  %v53 = vmul.f32 %v30, %v36
  %v54 = vmul.f32 %v30, %v40
  %v55 = vmul.f32 %v30, %v44
  %v56 = vmul.f32 %v30, %v48
  %v57 = vld [vmem:[%s2] sm:$0xf]
  %v59 = vlaneseq
  %v60 = vshrl.u32 %v59, 7
  %v61 = vsub.s32 0, %v60
  %v62 = vrot.slane %v57, %v61
  %v63 = vlaneseq
  %v64 = vshrl.u32 %v63, 7
  %v65 = vsub.s32 1, %v64
  %v66 = vrot.slane %v57, %v65
  %v67 = vlaneseq
  %v68 = vshrl.u32 %v67, 7
  %v69 = vsub.s32 2, %v68
  %v70 = vrot.slane %v57, %v69
  %v71 = vlaneseq
  %v72 = vshrl.u32 %v71, 7
  %v73 = vsub.s32 3, %v72
  %v74 = vrot.slane %v57, %v73
  %v79 = vadd.f32 %v53, %v62
  %v80 = vadd.f32 %v54, %v66
  %v81 = vadd.f32 %v55, %v70
  %v82 = vadd.f32 %v56, %v74
  %83 = vst [vmem:[#allocation2] sm:$0xff] %v79
  %84 = vst [vmem:[#allocation2 + $0x8] sm:$0xff] %v80
  %85 = vst [vmem:[#allocation2 + $0x10] sm:$0xff] %v81
  %86 = vst [vmem:[#allocation2 + $0x18] sm:$0xff] %v82
  %v87 = vld [vmem:[%s3] sm:$0xff]
  %v88 = vld [vmem:[%s3 + $0x8] sm:$0xff]
  %v89 = vld [vmem:[%s3 + $0x10] sm:$0xff]
  %v90 = vld [vmem:[%s3 + $0x18] sm:$0xff]
  %v91 = vld [vmem:[%s3 + $0x20] sm:$0xff]
  %v92 = vld [vmem:[%s3 + $0x28] sm:$0xff]
  %v93 = vld [vmem:[%s3 + $0x30] sm:$0xff]
  %v94 = vld [vmem:[%s3 + $0x38] sm:$0xff]
  %v95 = vld [vmem:[%s3 + $0x40] sm:$0xff]
  %v96 = vld [vmem:[%s3 + $0x48] sm:$0xff]
  %v97 = vld [vmem:[%s3 + $0x50] sm:$0xff]
  %v98 = vld [vmem:[%s3 + $0x58] sm:$0xff]
  %v99 = vld [vmem:[%s3 + $0x60] sm:$0xff]
  %v100 = vld [vmem:[%s3 + $0x68] sm:$0xff]
  %v101 = vld [vmem:[%s3 + $0x70] sm:$0xff]
  %v102 = vld [vmem:[%s3 + $0x78] sm:$0xff]
  %v103 = vld [vmem:[%s3 + $0x80] sm:$0xff]
  %v104 = vld [vmem:[%s3 + $0x88] sm:$0xff]
  %v105 = vld [vmem:[%s3 + $0x90] sm:$0xff]
  %v106 = vld [vmem:[%s3 + $0x98] sm:$0xff]
  %v107 = vld [vmem:[%s3 + $0xa0] sm:$0xff]
  %v108 = vld [vmem:[%s3 + $0xa8] sm:$0xff]
  %v109 = vld [vmem:[%s3 + $0xb0] sm:$0xff]
  %v110 = vld [vmem:[%s3 + $0xb8] sm:$0xff]
  %v111 = vld [vmem:[%s3 + $0xc0] sm:$0xff]
  %v112 = vld [vmem:[%s3 + $0xc8] sm:$0xff]
  %v113 = vld [vmem:[%s3 + $0xd0] sm:$0xff]
  %v114 = vld [vmem:[%s3 + $0xd8] sm:$0xff]
  %v115 = vld [vmem:[%s3 + $0xe0] sm:$0xff]
  %v116 = vld [vmem:[%s3 + $0xe8] sm:$0xff]
  %v117 = vld [vmem:[%s3 + $0xf0] sm:$0xff]
  %v118 = vld [vmem:[%s3 + $0xf8] sm:$0xff]
  %v119 = vld [vmem:[%s3 + $0x100] sm:$0xff]
  %v120 = vld [vmem:[%s3 + $0x108] sm:$0xff]
  %v121 = vld [vmem:[%s3 + $0x110] sm:$0xff]
  %v122 = vld [vmem:[%s3 + $0x118] sm:$0xff]
  %v123 = vld [vmem:[%s3 + $0x120] sm:$0xff]
  %v124 = vld [vmem:[%s3 + $0x128] sm:$0xff]
  %v125 = vld [vmem:[%s3 + $0x130] sm:$0xff]
  %v126 = vld [vmem:[%s3 + $0x138] sm:$0xff]
  %v127 = vld [vmem:[%s3 + $0x140] sm:$0xff]
  %v128 = vld [vmem:[%s3 + $0x148] sm:$0xff]
  %v129 = vld [vmem:[%s3 + $0x150] sm:$0xff]
  %v130 = vld [vmem:[%s3 + $0x158] sm:$0xff]
  %v131 = vld [vmem:[%s3 + $0x160] sm:$0xff]
  %v132 = vld [vmem:[%s3 + $0x168] sm:$0xff]
  %v133 = vld [vmem:[%s3 + $0x170] sm:$0xff]
  %v134 = vld [vmem:[%s3 + $0x178] sm:$0xff]
  %v135 = vld [vmem:[%s3 + $0x180] sm:$0xff]
  %v136 = vld [vmem:[%s3 + $0x188] sm:$0xff]
  %v137 = vld [vmem:[%s3 + $0x190] sm:$0xff]
  %v138 = vld [vmem:[%s3 + $0x198] sm:$0xff]
  %v139 = vld [vmem:[%s3 + $0x1a0] sm:$0xff]
  %v140 = vld [vmem:[%s3 + $0x1a8] sm:$0xff]
  %v141 = vld [vmem:[%s3 + $0x1b0] sm:$0xff]
  %v142 = vld [vmem:[%s3 + $0x1b8] sm:$0xff]
  %v143 = vld [vmem:[%s3 + $0x1c0] sm:$0xff]
  %v144 = vld [vmem:[%s3 + $0x1c8] sm:$0xff]
  %v145 = vld [vmem:[%s3 + $0x1d0] sm:$0xff]
  %v146 = vld [vmem:[%s3 + $0x1d8] sm:$0xff]
  %v147 = vld [vmem:[%s3 + $0x1e0] sm:$0xff]
  %v148 = vld [vmem:[%s3 + $0x1e8] sm:$0xff]
  %v149 = vld [vmem:[%s3 + $0x1f0] sm:$0xff]
  %v150 = vld [vmem:[%s3 + $0x1f8] sm:$0xff]
  %v151 = vld [vmem:[#allocation2] ss:$8 sm:$0xf]
  %v153 = vlaneseq
  %v154 = vshrl.u32 %v153, 7
  %v155 = vsub.s32 0, %v154
  %v156 = vrot.slane %v151, %v155
  %v157 = vlaneseq
  %v158 = vshrl.u32 %v157, 7
  %v159 = vsub.s32 1, %v158
  %v160 = vrot.slane %v151, %v159
  %v161 = vlaneseq
  %v162 = vshrl.u32 %v161, 7
  %v163 = vsub.s32 2, %v162
  %v164 = vrot.slane %v151, %v163
  %v165 = vlaneseq
  %v166 = vshrl.u32 %v165, 7
  %v167 = vsub.s32 3, %v166
  %v168 = vrot.slane %v151, %v167
  %173 = vmatprep.subr.mxu0 %v148
  %174 = vmatpush1.msra.mxu0 %v147
  %175 = vmatprep.subr.mxu0 %v144
  %176 = vmatpush1.msra.mxu0 %v143
  %177 = vmatprep.subr.mxu0 %v140
  %178 = vmatpush1.msra.mxu0 %v139
  %179 = vmatprep.subr.mxu0 %v136
  %180 = vmatpush1.msra.mxu0 %v135
  %181 = vmatprep.subr.mxu0 %v132
  %182 = vmatpush1.msra.mxu0 %v131
  %183 = vmatprep.subr.mxu0 %v128
  %184 = vmatpush1.msra.mxu0 %v127
  %185 = vmatprep.subr.mxu0 %v124
  %186 = vmatpush1.msra.mxu0 %v123
  %187 = vmatprep.subr.mxu0 %v120
  %188 = vmatpush1.msra.mxu0 %v119
  %189 = vmatprep.subr.mxu0 %v116
  %190 = vmatpush1.msra.mxu0 %v115
  %191 = vmatprep.subr.mxu0 %v112
  %192 = vmatpush1.msra.mxu0 %v111
  %193 = vmatprep.subr.mxu0 %v108
  %194 = vmatpush1.msra.mxu0 %v107
  %195 = vmatprep.subr.mxu0 %v104
  %196 = vmatpush1.msra.mxu0 %v103
  %197 = vmatprep.subr.mxu0 %v100
  %198 = vmatpush1.msra.mxu0 %v99
  %199 = vmatprep.subr.mxu0 %v96
  %200 = vmatpush1.msra.mxu0 %v95
  %201 = vmatprep.subr.mxu0 %v92
  %202 = vmatpush1.msra.mxu0 %v91
  %203 = vmatprep.subr.mxu0 %v88
  %204 = vmatpush1.msra.mxu0 %v87
  %205 = vmatprep.subr.mxu0 0.0
  %206 = vmatpush2.msra.mxu0 0.0
  %207 = vmatprep.subr.mxu0 0.0
  %208 = vmatpush2.msra.mxu0 0.0
  %209 = vmatprep.subr.mxu0 0.0
  %210 = vmatpush2.msra.mxu0 0.0
  %211 = vmatprep.subr.mxu0 0.0
  %212 = vmatpush2.msra.mxu0 0.0
  %213 = vmatprep.subr.mxu0 0.0
  %214 = vmatpush2.msra.mxu0 0.0
  %215 = vmatprep.subr.mxu0 0.0
  %216 = vmatpush2.msra.mxu0 0.0
  %217 = vmatprep.subr.mxu0 0.0
  %218 = vmatpush2.msra.mxu0 0.0
  %219 = vmatprep.subr.mxu0 0.0
  %220 = vmatpush2.msra.mxu0 0.0
  %221 = vmatprep.subr.mxu0 0.0
  %222 = vmatpush2.msra.mxu0 0.0
  %223 = vmatprep.subr.mxu0 0.0
  %224 = vmatpush2.msra.mxu0 0.0
  %225 = vmatprep.subr.mxu0 0.0
  %226 = vmatpush2.msra.mxu0 0.0
  %227 = vmatprep.subr.mxu0 0.0
  %228 = vmatpush2.msra.mxu0 0.0
  %229 = vmatprep.subr.mxu0 0.0
  %230 = vmatpush2.msra.mxu0 0.0
  %231 = vmatprep.subr.mxu0 0.0
  %232 = vmatpush2.msra.mxu0 0.0
  %233 = vmatprep.subr.mxu0 0.0
  %234 = vmatpush2.msra.mxu0 0.0
  %235 = vmatprep.subr.mxu0 0.0
  %236 = vmatpush2.msra.mxu0 0.0
  %237 = vmatprep.mubr.f32.mxu0 0.0
  %238 = vmatmul.mubr.f32.gmra.mxu0 0.0
  %v239 = vpop.f32.mrf.mxu0
  %v240 = vadd.f32 %v156, %v239
  %v241 = vpop.f32.mrf.mxu0
  %v242 = vadd.f32 %v160, %v241
  %243 = vdwg.mxu0
  %244 = vmatprep.subr.mxu0 %v150
  %245 = vmatpush1.msra.mxu0 %v149
  %246 = vmatprep.subr.mxu0 %v146
  %247 = vmatpush1.msra.mxu0 %v145
  %248 = vmatprep.subr.mxu0 %v142
  %249 = vmatpush1.msra.mxu0 %v141
  %250 = vmatprep.subr.mxu0 %v138
  %251 = vmatpush1.msra.mxu0 %v137
  %252 = vmatprep.subr.mxu0 %v134
  %253 = vmatpush1.msra.mxu0 %v133
  %254 = vmatprep.subr.mxu0 %v130
  %255 = vmatpush1.msra.mxu0 %v129
  %256 = vmatprep.subr.mxu0 %v126
  %257 = vmatpush1.msra.mxu0 %v125
  %258 = vmatprep.subr.mxu0 %v122
  %259 = vmatpush1.msra.mxu0 %v121
  %260 = vmatprep.subr.mxu0 %v118
  %261 = vmatpush1.msra.mxu0 %v117
  %262 = vmatprep.subr.mxu0 %v114
  %263 = vmatpush1.msra.mxu0 %v113
  %264 = vmatprep.subr.mxu0 %v110
  %265 = vmatpush1.msra.mxu0 %v109
  %266 = vmatprep.subr.mxu0 %v106
  %267 = vmatpush1.msra.mxu0 %v105
  %268 = vmatprep.subr.mxu0 %v102
  %269 = vmatpush1.msra.mxu0 %v101
  %270 = vmatprep.subr.mxu0 %v98
  %271 = vmatpush1.msra.mxu0 %v97
  %272 = vmatprep.subr.mxu0 %v94
  %273 = vmatpush1.msra.mxu0 %v93
  %274 = vmatprep.subr.mxu0 %v90
  %275 = vmatpush1.msra.mxu0 %v89
  %276 = vmatprep.subr.mxu0 0.0
  %277 = vmatpush2.msra.mxu0 0.0
  %278 = vmatprep.subr.mxu0 0.0
  %279 = vmatpush2.msra.mxu0 0.0
  %280 = vmatprep.subr.mxu0 0.0
  %281 = vmatpush2.msra.mxu0 0.0
  %282 = vmatprep.subr.mxu0 0.0
  %283 = vmatpush2.msra.mxu0 0.0
  %284 = vmatprep.subr.mxu0 0.0
  %285 = vmatpush2.msra.mxu0 0.0
  %286 = vmatprep.subr.mxu0 0.0
  %287 = vmatpush2.msra.mxu0 0.0
  %288 = vmatprep.subr.mxu0 0.0
  %289 = vmatpush2.msra.mxu0 0.0
  %290 = vmatprep.subr.mxu0 0.0
  %291 = vmatpush2.msra.mxu0 0.0
  %292 = vmatprep.subr.mxu0 0.0
  %293 = vmatpush2.msra.mxu0 0.0
  %294 = vmatprep.subr.mxu0 0.0
  %295 = vmatpush2.msra.mxu0 0.0
  %296 = vmatprep.subr.mxu0 0.0
  %297 = vmatpush2.msra.mxu0 0.0
  %298 = vmatprep.subr.mxu0 0.0
  %299 = vmatpush2.msra.mxu0 0.0
  %300 = vmatprep.subr.mxu0 0.0
  %301 = vmatpush2.msra.mxu0 0.0
  %302 = vmatprep.subr.mxu0 0.0
  %303 = vmatpush2.msra.mxu0 0.0
  %304 = vmatprep.subr.mxu0 0.0
  %305 = vmatpush2.msra.mxu0 0.0
  %306 = vmatprep.subr.mxu0 0.0
  %307 = vmatpush2.msra.mxu0 0.0
  %308 = vmatprep.mubr.f32.mxu0 0.0
  %309 = vmatmul.mubr.f32.gmra.mxu0 0.0
  %v310 = vpop.f32.mrf.mxu0
  %v311 = vadd.f32 %v164, %v310
  %v312 = vpop.f32.mrf.mxu0
  %v313 = vadd.f32 %v168, %v312
  %314 = vdwg.mxu0
  %v315 = vxor.u32 %v240, 2147483648
  %v316 = vmul.f32 %v315, 1.442695
  %v317 = vpow.pop %v316
  %v318 = vadd.f32 %v317, 1.0
  %v319 = vrcp.pop %v318
  %v320 = vmul.f32 1.0, %v319
  %v321 = vxor.u32 %v242, 2147483648
  %v322 = vmul.f32 %v321, 1.442695
  %v323 = vpow.pop %v322
  %v324 = vadd.f32 %v323, 1.0
  %v325 = vrcp.pop %v324
  %v326 = vmul.f32 1.0, %v325
  %v327 = vtanh.pop %v311
  %v328 = vxor.u32 %v313, 2147483648
  %v329 = vmul.f32 %v328, 1.442695
  %v330 = vpow.pop %v329
  %v331 = vadd.f32 %v330, 1.0
  %v332 = vrcp.pop %v331
  %v333 = vmul.f32 1.0, %v332
  %v334 = vmul.f32 %v326, 0.0
  %v335 = vmul.f32 %v320, %v327
  %v336 = vadd.f32 %v334, %v335
  %v337 = vtanh.pop %v336
  %v338 = vmul.f32 %v333, %v337
  %339 = vst [vmem:[#allocation3] sm:$0x1] %v338
  %v340 = vld [vmem:[%s3] sm:$0xff]
  %v341 = vld [vmem:[%s3 + $0x8] sm:$0xff]
  %v342 = vld [vmem:[%s3 + $0x10] sm:$0xff]
  %v343 = vld [vmem:[%s3 + $0x18] sm:$0xff]
  %v344 = vld [vmem:[%s3 + $0x20] sm:$0xff]
  %v345 = vld [vmem:[%s3 + $0x28] sm:$0xff]
  %v346 = vld [vmem:[%s3 + $0x30] sm:$0xff]
  %v347 = vld [vmem:[%s3 + $0x38] sm:$0xff]
  %v348 = vld [vmem:[%s3 + $0x40] sm:$0xff]
  %v349 = vld [vmem:[%s3 + $0x48] sm:$0xff]
  %v350 = vld [vmem:[%s3 + $0x50] sm:$0xff]
  %v351 = vld [vmem:[%s3 + $0x58] sm:$0xff]
  %v352 = vld [vmem:[%s3 + $0x60] sm:$0xff]
  %v353 = vld [vmem:[%s3 + $0x68] sm:$0xff]
  %v354 = vld [vmem:[%s3 + $0x70] sm:$0xff]
  %v355 = vld [vmem:[%s3 + $0x78] sm:$0xff]
  %v356 = vld [vmem:[%s3 + $0x80] sm:$0xff]
  %v357 = vld [vmem:[%s3 + $0x88] sm:$0xff]
  %v358 = vld [vmem:[%s3 + $0x90] sm:$0xff]
  %v359 = vld [vmem:[%s3 + $0x98] sm:$0xff]
  %v360 = vld [vmem:[%s3 + $0xa0] sm:$0xff]
  %v361 = vld [vmem:[%s3 + $0xa8] sm:$0xff]
  %v362 = vld [vmem:[%s3 + $0xb0] sm:$0xff]
  %v363 = vld [vmem:[%s3 + $0xb8] sm:$0xff]
  %v364 = vld [vmem:[%s3 + $0xc0] sm:$0xff]
  %v365 = vld [vmem:[%s3 + $0xc8] sm:$0xff]
  %v366 = vld [vmem:[%s3 + $0xd0] sm:$0xff]
  %v367 = vld [vmem:[%s3 + $0xd8] sm:$0xff]
  %v368 = vld [vmem:[%s3 + $0xe0] sm:$0xff]
  %v369 = vld [vmem:[%s3 + $0xe8] sm:$0xff]
  %v370 = vld [vmem:[%s3 + $0xf0] sm:$0xff]
  %v371 = vld [vmem:[%s3 + $0xf8] sm:$0xff]
  %v372 = vld [vmem:[%s3 + $0x100] sm:$0xff]
  %v373 = vld [vmem:[%s3 + $0x108] sm:$0xff]
  %v374 = vld [vmem:[%s3 + $0x110] sm:$0xff]
  %v375 = vld [vmem:[%s3 + $0x118] sm:$0xff]
  %v376 = vld [vmem:[%s3 + $0x120] sm:$0xff]
  %v377 = vld [vmem:[%s3 + $0x128] sm:$0xff]
  %v378 = vld [vmem:[%s3 + $0x130] sm:$0xff]
  %v379 = vld [vmem:[%s3 + $0x138] sm:$0xff]
  %v380 = vld [vmem:[%s3 + $0x140] sm:$0xff]
  %v381 = vld [vmem:[%s3 + $0x148] sm:$0xff]
  %v382 = vld [vmem:[%s3 + $0x150] sm:$0xff]
  %v383 = vld [vmem:[%s3 + $0x158] sm:$0xff]
  %v384 = vld [vmem:[%s3 + $0x160] sm:$0xff]
  %v385 = vld [vmem:[%s3 + $0x168] sm:$0xff]
  %v386 = vld [vmem:[%s3 + $0x170] sm:$0xff]
  %v387 = vld [vmem:[%s3 + $0x178] sm:$0xff]
  %v388 = vld [vmem:[%s3 + $0x180] sm:$0xff]
  %v389 = vld [vmem:[%s3 + $0x188] sm:$0xff]
  %v390 = vld [vmem:[%s3 + $0x190] sm:$0xff]
  %v391 = vld [vmem:[%s3 + $0x198] sm:$0xff]
  %v392 = vld [vmem:[%s3 + $0x1a0] sm:$0xff]
  %v393 = vld [vmem:[%s3 + $0x1a8] sm:$0xff]
  %v394 = vld [vmem:[%s3 + $0x1b0] sm:$0xff]
  %v395 = vld [vmem:[%s3 + $0x1b8] sm:$0xff]
  %v396 = vld [vmem:[%s3 + $0x1c0] sm:$0xff]
  %v397 = vld [vmem:[%s3 + $0x1c8] sm:$0xff]
  %v398 = vld [vmem:[%s3 + $0x1d0] sm:$0xff]
  %v399 = vld [vmem:[%s3 + $0x1d8] sm:$0xff]
  %v400 = vld [vmem:[%s3 + $0x1e0] sm:$0xff]
  %v401 = vld [vmem:[%s3 + $0x1e8] sm:$0xff]
  %v402 = vld [vmem:[%s3 + $0x1f0] sm:$0xff]
  %v403 = vld [vmem:[%s3 + $0x1f8] sm:$0xff]
  %s404 = scalar_lea.vmem [#allocation2], 1
  %v405 = vld [vmem:[%s404] ss:$8 sm:$0xf]
  %v407 = vlaneseq
  %v408 = vshrl.u32 %v407, 7
  %v409 = vsub.s32 0, %v408
  %v410 = vrot.slane %v405, %v409
  %v411 = vlaneseq
  %v412 = vshrl.u32 %v411, 7
  %v413 = vsub.s32 1, %v412
  %v414 = vrot.slane %v405, %v413
  %v415 = vlaneseq
  %v416 = vshrl.u32 %v415, 7
  %v417 = vsub.s32 2, %v416
  %v418 = vrot.slane %v405, %v417
  %v419 = vlaneseq
  %v420 = vshrl.u32 %v419, 7
  %v421 = vsub.s32 3, %v420
  %v422 = vrot.slane %v405, %v421
  %427 = vmatprep.subr.mxu0 %v401
  %428 = vmatpush1.msra.mxu0 %v400
  %429 = vmatprep.subr.mxu0 %v397
  %430 = vmatpush1.msra.mxu0 %v396
  %431 = vmatprep.subr.mxu0 %v393
  %432 = vmatpush1.msra.mxu0 %v392
  %433 = vmatprep.subr.mxu0 %v389
  %434 = vmatpush1.msra.mxu0 %v388
  %435 = vmatprep.subr.mxu0 %v385
  %436 = vmatpush1.msra.mxu0 %v384
  %437 = vmatprep.subr.mxu0 %v381
  %438 = vmatpush1.msra.mxu0 %v380
  %439 = vmatprep.subr.mxu0 %v377
  %440 = vmatpush1.msra.mxu0 %v376
  %441 = vmatprep.subr.mxu0 %v373
  %442 = vmatpush1.msra.mxu0 %v372
  %443 = vmatprep.subr.mxu0 %v369
  %444 = vmatpush1.msra.mxu0 %v368
  %445 = vmatprep.subr.mxu0 %v365
  %446 = vmatpush1.msra.mxu0 %v364
  %447 = vmatprep.subr.mxu0 %v361
  %448 = vmatpush1.msra.mxu0 %v360
  %449 = vmatprep.subr.mxu0 %v357
  %450 = vmatpush1.msra.mxu0 %v356
  %451 = vmatprep.subr.mxu0 %v353
  %452 = vmatpush1.msra.mxu0 %v352
  %453 = vmatprep.subr.mxu0 %v349
  %454 = vmatpush1.msra.mxu0 %v348
  %455 = vmatprep.subr.mxu0 %v345
  %456 = vmatpush1.msra.mxu0 %v344
  %457 = vmatprep.subr.mxu0 %v341
  %458 = vmatpush1.msra.mxu0 %v340
  %459 = vmatprep.subr.mxu0 0.0
  %460 = vmatpush2.msra.mxu0 0.0
  %461 = vmatprep.subr.mxu0 0.0
  %462 = vmatpush2.msra.mxu0 0.0
  %463 = vmatprep.subr.mxu0 0.0
  %464 = vmatpush2.msra.mxu0 0.0
  %465 = vmatprep.subr.mxu0 0.0
  %466 = vmatpush2.msra.mxu0 0.0
  %467 = vmatprep.subr.mxu0 0.0
  %468 = vmatpush2.msra.mxu0 0.0
  %469 = vmatprep.subr.mxu0 0.0
  %470 = vmatpush2.msra.mxu0 0.0
  %471 = vmatprep.subr.mxu0 0.0
  %472 = vmatpush2.msra.mxu0 0.0
  %473 = vmatprep.subr.mxu0 0.0
  %474 = vmatpush2.msra.mxu0 0.0
  %475 = vmatprep.subr.mxu0 0.0
  %476 = vmatpush2.msra.mxu0 0.0
  %477 = vmatprep.subr.mxu0 0.0
  %478 = vmatpush2.msra.mxu0 0.0
  %479 = vmatprep.subr.mxu0 0.0
  %480 = vmatpush2.msra.mxu0 0.0
  %481 = vmatprep.subr.mxu0 0.0
  %482 = vmatpush2.msra.mxu0 0.0
  %483 = vmatprep.subr.mxu0 0.0
  %484 = vmatpush2.msra.mxu0 0.0
  %485 = vmatprep.subr.mxu0 0.0
  %486 = vmatpush2.msra.mxu0 0.0
  %487 = vmatprep.subr.mxu0 0.0
  %488 = vmatpush2.msra.mxu0 0.0
  %489 = vmatprep.subr.mxu0 0.0
  %490 = vmatpush2.msra.mxu0 0.0
  %491 = vmatprep.mubr.f32.mxu0 0.0
  %492 = vmatmul.mubr.f32.gmra.mxu0 %v338
  %v493 = vpop.f32.mrf.mxu0
  %v494 = vadd.f32 %v410, %v493
  %v495 = vpop.f32.mrf.mxu0
  %v496 = vadd.f32 %v414, %v495
  %497 = vdwg.mxu0
  %498 = vmatprep.subr.mxu0 %v403
  %499 = vmatpush1.msra.mxu0 %v402
  %500 = vmatprep.subr.mxu0 %v399
  %501 = vmatpush1.msra.mxu0 %v398
  %502 = vmatprep.subr.mxu0 %v395
  %503 = vmatpush1.msra.mxu0 %v394
  %504 = vmatprep.subr.mxu0 %v391
  %505 = vmatpush1.msra.mxu0 %v390
  %506 = vmatprep.subr.mxu0 %v387
  %507 = vmatpush1.msra.mxu0 %v386
  %508 = vmatprep.subr.mxu0 %v383
  %509 = vmatpush1.msra.mxu0 %v382
  %510 = vmatprep.subr.mxu0 %v379
  %511 = vmatpush1.msra.mxu0 %v378
  %512 = vmatprep.subr.mxu0 %v375
  %513 = vmatpush1.msra.mxu0 %v374
  %514 = vmatprep.subr.mxu0 %v371
  %515 = vmatpush1.msra.mxu0 %v370
  %516 = vmatprep.subr.mxu0 %v367
  %517 = vmatpush1.msra.mxu0 %v366
  %518 = vmatprep.subr.mxu0 %v363
  %519 = vmatpush1.msra.mxu0 %v362
  %520 = vmatprep.subr.mxu0 %v359
  %521 = vmatpush1.msra.mxu0 %v358
  %522 = vmatprep.subr.mxu0 %v355
  %523 = vmatpush1.msra.mxu0 %v354
  %524 = vmatprep.subr.mxu0 %v351
  %525 = vmatpush1.msra.mxu0 %v350
  %526 = vmatprep.subr.mxu0 %v347
  %527 = vmatpush1.msra.mxu0 %v346
  %528 = vmatprep.subr.mxu0 %v343
  %529 = vmatpush1.msra.mxu0 %v342
  %530 = vmatprep.subr.mxu0 0.0
  %531 = vmatpush2.msra.mxu0 0.0
  %532 = vmatprep.subr.mxu0 0.0
  %533 = vmatpush2.msra.mxu0 0.0
  %534 = vmatprep.subr.mxu0 0.0
  %535 = vmatpush2.msra.mxu0 0.0
  %536 = vmatprep.subr.mxu0 0.0
  %537 = vmatpush2.msra.mxu0 0.0
  %538 = vmatprep.subr.mxu0 0.0
  %539 = vmatpush2.msra.mxu0 0.0
  %540 = vmatprep.subr.mxu0 0.0
  %541 = vmatpush2.msra.mxu0 0.0
  %542 = vmatprep.subr.mxu0 0.0
  %543 = vmatpush2.msra.mxu0 0.0
  %544 = vmatprep.subr.mxu0 0.0
  %545 = vmatpush2.msra.mxu0 0.0
  %546 = vmatprep.subr.mxu0 0.0
  %547 = vmatpush2.msra.mxu0 0.0
  %548 = vmatprep.subr.mxu0 0.0
  %549 = vmatpush2.msra.mxu0 0.0
  %550 = vmatprep.subr.mxu0 0.0
  %551 = vmatpush2.msra.mxu0 0.0
  %552 = vmatprep.subr.mxu0 0.0
  %553 = vmatpush2.msra.mxu0 0.0
  %554 = vmatprep.subr.mxu0 0.0
  %555 = vmatpush2.msra.mxu0 0.0
  %556 = vmatprep.subr.mxu0 0.0
  %557 = vmatpush2.msra.mxu0 0.0
  %558 = vmatprep.subr.mxu0 0.0
  %559 = vmatpush2.msra.mxu0 0.0
  %560 = vmatprep.subr.mxu0 0.0
  %561 = vmatpush2.msra.mxu0 0.0
  %562 = vmatprep.mubr.f32.mxu0 0.0
  %563 = vmatmul.mubr.f32.gmra.mxu0 %v338
  %v564 = vpop.f32.mrf.mxu0
  %v565 = vadd.f32 %v418, %v564
  %v566 = vpop.f32.mrf.mxu0
  %v567 = vadd.f32 %v422, %v566
  %568 = vdwg.mxu0
  %v569 = vxor.u32 %v494, 2147483648
  %v570 = vmul.f32 %v569, 1.442695
  %v571 = vpow.pop %v570
  %v572 = vadd.f32 %v571, 1.0
  %v573 = vrcp.pop %v572
  %v574 = vmul.f32 1.0, %v573
  %v575 = vxor.u32 %v496, 2147483648
  %v576 = vmul.f32 %v575, 1.442695
  %v577 = vpow.pop %v576
  %v578 = vadd.f32 %v577, 1.0
  %v579 = vrcp.pop %v578
  %v580 = vmul.f32 1.0, %v579
  %v581 = vtanh.pop %v565
  %v582 = vxor.u32 %v567, 2147483648
  %v583 = vmul.f32 %v582, 1.442695
  %v584 = vpow.pop %v583
  %v585 = vadd.f32 %v584, 1.0
  %v586 = vrcp.pop %v585
  %v587 = vmul.f32 1.0, %v586
  %v588 = vmul.f32 %v580, %v336
  %v589 = vmul.f32 %v574, %v581
  %v590 = vadd.f32 %v588, %v589
  %v591 = vtanh.pop %v590
  %v592 = vmul.f32 %v587, %v591
  %593 = vst [vmem:[#allocation3 + $0x1] sm:$0x1] %v592
  %v594 = vld [vmem:[%s3] sm:$0xff]
  %v595 = vld [vmem:[%s3 + $0x8] sm:$0xff]
  %v596 = vld [vmem:[%s3 + $0x10] sm:$0xff]
  %v597 = vld [vmem:[%s3 + $0x18] sm:$0xff]
  %v598 = vld [vmem:[%s3 + $0x20] sm:$0xff]
  %v599 = vld [vmem:[%s3 + $0x28] sm:$0xff]
  %v600 = vld [vmem:[%s3 + $0x30] sm:$0xff]
  %v601 = vld [vmem:[%s3 + $0x38] sm:$0xff]
  %v602 = vld [vmem:[%s3 + $0x40] sm:$0xff]
  %v603 = vld [vmem:[%s3 + $0x48] sm:$0xff]
  %v604 = vld [vmem:[%s3 + $0x50] sm:$0xff]
  %v605 = vld [vmem:[%s3 + $0x58] sm:$0xff]
  %v606 = vld [vmem:[%s3 + $0x60] sm:$0xff]
  %v607 = vld [vmem:[%s3 + $0x68] sm:$0xff]
  %v608 = vld [vmem:[%s3 + $0x70] sm:$0xff]
  %v609 = vld [vmem:[%s3 + $0x78] sm:$0xff]
  %v610 = vld [vmem:[%s3 + $0x80] sm:$0xff]
  %v611 = vld [vmem:[%s3 + $0x88] sm:$0xff]
  %v612 = vld [vmem:[%s3 + $0x90] sm:$0xff]
  %v613 = vld [vmem:[%s3 + $0x98] sm:$0xff]
  %v614 = vld [vmem:[%s3 + $0xa0] sm:$0xff]
  %v615 = vld [vmem:[%s3 + $0xa8] sm:$0xff]
  %v616 = vld [vmem:[%s3 + $0xb0] sm:$0xff]
  %v617 = vld [vmem:[%s3 + $0xb8] sm:$0xff]
  %v618 = vld [vmem:[%s3 + $0xc0] sm:$0xff]
  %v619 = vld [vmem:[%s3 + $0xc8] sm:$0xff]
  %v620 = vld [vmem:[%s3 + $0xd0] sm:$0xff]
  %v621 = vld [vmem:[%s3 + $0xd8] sm:$0xff]
  %v622 = vld [vmem:[%s3 + $0xe0] sm:$0xff]
  %v623 = vld [vmem:[%s3 + $0xe8] sm:$0xff]
  %v624 = vld [vmem:[%s3 + $0xf0] sm:$0xff]
  %v625 = vld [vmem:[%s3 + $0xf8] sm:$0xff]
  %v626 = vld [vmem:[%s3 + $0x100] sm:$0xff]
  %v627 = vld [vmem:[%s3 + $0x108] sm:$0xff]
  %v628 = vld [vmem:[%s3 + $0x110] sm:$0xff]
  %v629 = vld [vmem:[%s3 + $0x118] sm:$0xff]
  %v630 = vld [vmem:[%s3 + $0x120] sm:$0xff]
  %v631 = vld [vmem:[%s3 + $0x128] sm:$0xff]
  %v632 = vld [vmem:[%s3 + $0x130] sm:$0xff]
  %v633 = vld [vmem:[%s3 + $0x138] sm:$0xff]
  %v634 = vld [vmem:[%s3 + $0x140] sm:$0xff]
  %v635 = vld [vmem:[%s3 + $0x148] sm:$0xff]
  %v636 = vld [vmem:[%s3 + $0x150] sm:$0xff]
  %v637 = vld [vmem:[%s3 + $0x158] sm:$0xff]
  %v638 = vld [vmem:[%s3 + $0x160] sm:$0xff]
  %v639 = vld [vmem:[%s3 + $0x168] sm:$0xff]
  %v640 = vld [vmem:[%s3 + $0x170] sm:$0xff]
  %v641 = vld [vmem:[%s3 + $0x178] sm:$0xff]
  %v642 = vld [vmem:[%s3 + $0x180] sm:$0xff]
  %v643 = vld [vmem:[%s3 + $0x188] sm:$0xff]
  %v644 = vld [vmem:[%s3 + $0x190] sm:$0xff]
  %v645 = vld [vmem:[%s3 + $0x198] sm:$0xff]
  %v646 = vld [vmem:[%s3 + $0x1a0] sm:$0xff]
  %v647 = vld [vmem:[%s3 + $0x1a8] sm:$0xff]
  %v648 = vld [vmem:[%s3 + $0x1b0] sm:$0xff]
  %v649 = vld [vmem:[%s3 + $0x1b8] sm:$0xff]
  %v650 = vld [vmem:[%s3 + $0x1c0] sm:$0xff]
  %v651 = vld [vmem:[%s3 + $0x1c8] sm:$0xff]
  %v652 = vld [vmem:[%s3 + $0x1d0] sm:$0xff]
  %v653 = vld [vmem:[%s3 + $0x1d8] sm:$0xff]
  %v654 = vld [vmem:[%s3 + $0x1e0] sm:$0xff]
  %v655 = vld [vmem:[%s3 + $0x1e8] sm:$0xff]
  %v656 = vld [vmem:[%s3 + $0x1f0] sm:$0xff]
  %v657 = vld [vmem:[%s3 + $0x1f8] sm:$0xff]
  %s658 = scalar_lea.vmem [#allocation2], 2
  %v659 = vld [vmem:[%s658] ss:$8 sm:$0xf]
  %v661 = vlaneseq
  %v662 = vshrl.u32 %v661, 7
  %v663 = vsub.s32 0, %v662
  %v664 = vrot.slane %v659, %v663
  %v665 = vlaneseq
  %v666 = vshrl.u32 %v665, 7
  %v667 = vsub.s32 1, %v666
  %v668 = vrot.slane %v659, %v667
  %v669 = vlaneseq
  %v670 = vshrl.u32 %v669, 7
  %v671 = vsub.s32 2, %v670
  %v672 = vrot.slane %v659, %v671
  %v673 = vlaneseq
  %v674 = vshrl.u32 %v673, 7
  %v675 = vsub.s32 3, %v674
  %v676 = vrot.slane %v659, %v675
  %681 = vmatprep.subr.mxu0 %v655
  %682 = vmatpush1.msra.mxu0 %v654
  %683 = vmatprep.subr.mxu0 %v651
  %684 = vmatpush1.msra.mxu0 %v650
  %685 = vmatprep.subr.mxu0 %v647
  %686 = vmatpush1.msra.mxu0 %v646
  %687 = vmatprep.subr.mxu0 %v643
  %688 = vmatpush1.msra.mxu0 %v642
  %689 = vmatprep.subr.mxu0 %v639
  %690 = vmatpush1.msra.mxu0 %v638
  %691 = vmatprep.subr.mxu0 %v635
  %692 = vmatpush1.msra.mxu0 %v634
  %693 = vmatprep.subr.mxu0 %v631
  %694 = vmatpush1.msra.mxu0 %v630
  %695 = vmatprep.subr.mxu0 %v627
  %696 = vmatpush1.msra.mxu0 %v626
  %697 = vmatprep.subr.mxu0 %v623
  %698 = vmatpush1.msra.mxu0 %v622
  %699 = vmatprep.subr.mxu0 %v619
  %700 = vmatpush1.msra.mxu0 %v618
  %701 = vmatprep.subr.mxu0 %v615
  %702 = vmatpush1.msra.mxu0 %v614
  %703 = vmatprep.subr.mxu0 %v611
  %704 = vmatpush1.msra.mxu0 %v610
  %705 = vmatprep.subr.mxu0 %v607
  %706 = vmatpush1.msra.mxu0 %v606
  %707 = vmatprep.subr.mxu0 %v603
  %708 = vmatpush1.msra.mxu0 %v602
  %709 = vmatprep.subr.mxu0 %v599
  %710 = vmatpush1.msra.mxu0 %v598
  %711 = vmatprep.subr.mxu0 %v595
  %712 = vmatpush1.msra.mxu0 %v594
  %713 = vmatprep.subr.mxu0 0.0
  %714 = vmatpush2.msra.mxu0 0.0
  %715 = vmatprep.subr.mxu0 0.0
  %716 = vmatpush2.msra.mxu0 0.0
  %717 = vmatprep.subr.mxu0 0.0
  %718 = vmatpush2.msra.mxu0 0.0
  %719 = vmatprep.subr.mxu0 0.0
  %720 = vmatpush2.msra.mxu0 0.0
  %721 = vmatprep.subr.mxu0 0.0
  %722 = vmatpush2.msra.mxu0 0.0
  %723 = vmatprep.subr.mxu0 0.0
  %724 = vmatpush2.msra.mxu0 0.0
  %725 = vmatprep.subr.mxu0 0.0
  %726 = vmatpush2.msra.mxu0 0.0
  %727 = vmatprep.subr.mxu0 0.0
  %728 = vmatpush2.msra.mxu0 0.0
  %729 = vmatprep.subr.mxu0 0.0
  %730 = vmatpush2.msra.mxu0 0.0
  %731 = vmatprep.subr.mxu0 0.0
  %732 = vmatpush2.msra.mxu0 0.0
  %733 = vmatprep.subr.mxu0 0.0
  %734 = vmatpush2.msra.mxu0 0.0
  %735 = vmatprep.subr.mxu0 0.0
  %736 = vmatpush2.msra.mxu0 0.0
  %737 = vmatprep.subr.mxu0 0.0
  %738 = vmatpush2.msra.mxu0 0.0
  %739 = vmatprep.subr.mxu0 0.0
  %740 = vmatpush2.msra.mxu0 0.0
  %741 = vmatprep.subr.mxu0 0.0
  %742 = vmatpush2.msra.mxu0 0.0
  %743 = vmatprep.subr.mxu0 0.0
  %744 = vmatpush2.msra.mxu0 0.0
  %745 = vmatprep.mubr.f32.mxu0 0.0
  %746 = vmatmul.mubr.f32.gmra.mxu0 %v592
  %v747 = vpop.f32.mrf.mxu0
  %v748 = vadd.f32 %v664, %v747
  %v749 = vpop.f32.mrf.mxu0
  %v750 = vadd.f32 %v668, %v749
  %751 = vdwg.mxu0
  %752 = vmatprep.subr.mxu0 %v657
  %753 = vmatpush1.msra.mxu0 %v656
  %754 = vmatprep.subr.mxu0 %v653
  %755 = vmatpush1.msra.mxu0 %v652
  %756 = vmatprep.subr.mxu0 %v649
  %757 = vmatpush1.msra.mxu0 %v648
  %758 = vmatprep.subr.mxu0 %v645
  %759 = vmatpush1.msra.mxu0 %v644
  %760 = vmatprep.subr.mxu0 %v641
  %761 = vmatpush1.msra.mxu0 %v640
  %762 = vmatprep.subr.mxu0 %v637
  %763 = vmatpush1.msra.mxu0 %v636
  %764 = vmatprep.subr.mxu0 %v633
  %765 = vmatpush1.msra.mxu0 %v632
  %766 = vmatprep.subr.mxu0 %v629
  %767 = vmatpush1.msra.mxu0 %v628
  %768 = vmatprep.subr.mxu0 %v625
  %769 = vmatpush1.msra.mxu0 %v624
  %770 = vmatprep.subr.mxu0 %v621
  %771 = vmatpush1.msra.mxu0 %v620
  %772 = vmatprep.subr.mxu0 %v617
  %773 = vmatpush1.msra.mxu0 %v616
  %774 = vmatprep.subr.mxu0 %v613
  %775 = vmatpush1.msra.mxu0 %v612
  %776 = vmatprep.subr.mxu0 %v609
  %777 = vmatpush1.msra.mxu0 %v608
  %778 = vmatprep.subr.mxu0 %v605
  %779 = vmatpush1.msra.mxu0 %v604
  %780 = vmatprep.subr.mxu0 %v601
  %781 = vmatpush1.msra.mxu0 %v600
  %782 = vmatprep.subr.mxu0 %v597
  %783 = vmatpush1.msra.mxu0 %v596
  %784 = vmatprep.subr.mxu0 0.0
  %785 = vmatpush2.msra.mxu0 0.0
  %786 = vmatprep.subr.mxu0 0.0
  %787 = vmatpush2.msra.mxu0 0.0
  %788 = vmatprep.subr.mxu0 0.0
  %789 = vmatpush2.msra.mxu0 0.0
  %790 = vmatprep.subr.mxu0 0.0
  %791 = vmatpush2.msra.mxu0 0.0
  %792 = vmatprep.subr.mxu0 0.0
  %793 = vmatpush2.msra.mxu0 0.0
  %794 = vmatprep.subr.mxu0 0.0
  %795 = vmatpush2.msra.mxu0 0.0
  %796 = vmatprep.subr.mxu0 0.0
  %797 = vmatpush2.msra.mxu0 0.0
  %798 = vmatprep.subr.mxu0 0.0
  %799 = vmatpush2.msra.mxu0 0.0
  %800 = vmatprep.subr.mxu0 0.0
  %801 = vmatpush2.msra.mxu0 0.0
  %802 = vmatprep.subr.mxu0 0.0
  %803 = vmatpush2.msra.mxu0 0.0
  %804 = vmatprep.subr.mxu0 0.0
  %805 = vmatpush2.msra.mxu0 0.0
  %806 = vmatprep.subr.mxu0 0.0
  %807 = vmatpush2.msra.mxu0 0.0
  %808 = vmatprep.subr.mxu0 0.0
  %809 = vmatpush2.msra.mxu0 0.0
  %810 = vmatprep.subr.mxu0 0.0
  %811 = vmatpush2.msra.mxu0 0.0
  %812 = vmatprep.subr.mxu0 0.0
  %813 = vmatpush2.msra.mxu0 0.0
  %814 = vmatprep.subr.mxu0 0.0
  %815 = vmatpush2.msra.mxu0 0.0
  %816 = vmatprep.mubr.f32.mxu0 0.0
  %817 = vmatmul.mubr.f32.gmra.mxu0 %v592
  %v818 = vpop.f32.mrf.mxu0
  %v819 = vadd.f32 %v672, %v818
  %v820 = vpop.f32.mrf.mxu0
  %v821 = vadd.f32 %v676, %v820
  %822 = vdwg.mxu0
  %v823 = vxor.u32 %v748, 2147483648
  %v824 = vmul.f32 %v823, 1.442695
  %v825 = vpow.pop %v824
  %v826 = vadd.f32 %v825, 1.0
  %v827 = vrcp.pop %v826
  %v828 = vmul.f32 1.0, %v827
  %v829 = vxor.u32 %v750, 2147483648
  %v830 = vmul.f32 %v829, 1.442695
  %v831 = vpow.pop %v830
  %v832 = vadd.f32 %v831, 1.0
  %v833 = vrcp.pop %v832
  %v834 = vmul.f32 1.0, %v833
  %v835 = vtanh.pop %v819
  %v836 = vxor.u32 %v821, 2147483648
  %v837 = vmul.f32 %v836, 1.442695
  %v838 = vpow.pop %v837
  %v839 = vadd.f32 %v838, 1.0
  %v840 = vrcp.pop %v839
  %v841 = vmul.f32 1.0, %v840
  %v842 = vmul.f32 %v834, %v590
  %v843 = vmul.f32 %v828, %v835
  %v844 = vadd.f32 %v842, %v843
  %v845 = vtanh.pop %v844
  %v846 = vmul.f32 %v841, %v845
  %847 = vst [vmem:[#allocation3 + $0x2] sm:$0x1] %v846
  %v848 = vld [vmem:[%s3] sm:$0xff]
  %v849 = vld [vmem:[%s3 + $0x8] sm:$0xff]
  %v850 = vld [vmem:[%s3 + $0x10] sm:$0xff]
  %v851 = vld [vmem:[%s3 + $0x18] sm:$0xff]
  %v852 = vld [vmem:[%s3 + $0x20] sm:$0xff]
  %v853 = vld [vmem:[%s3 + $0x28] sm:$0xff]
  %v854 = vld [vmem:[%s3 + $0x30] sm:$0xff]
  %v855 = vld [vmem:[%s3 + $0x38] sm:$0xff]
  %v856 = vld [vmem:[%s3 + $0x40] sm:$0xff]
  %v857 = vld [vmem:[%s3 + $0x48] sm:$0xff]
  %v858 = vld [vmem:[%s3 + $0x50] sm:$0xff]
  %v859 = vld [vmem:[%s3 + $0x58] sm:$0xff]
  %v860 = vld [vmem:[%s3 + $0x60] sm:$0xff]
  %v861 = vld [vmem:[%s3 + $0x68] sm:$0xff]
  %v862 = vld [vmem:[%s3 + $0x70] sm:$0xff]
  %v863 = vld [vmem:[%s3 + $0x78] sm:$0xff]
  %v864 = vld [vmem:[%s3 + $0x80] sm:$0xff]
  %v865 = vld [vmem:[%s3 + $0x88] sm:$0xff]
  %v866 = vld [vmem:[%s3 + $0x90] sm:$0xff]
  %v867 = vld [vmem:[%s3 + $0x98] sm:$0xff]
  %v868 = vld [vmem:[%s3 + $0xa0] sm:$0xff]
  %v869 = vld [vmem:[%s3 + $0xa8] sm:$0xff]
  %v870 = vld [vmem:[%s3 + $0xb0] sm:$0xff]
  %v871 = vld [vmem:[%s3 + $0xb8] sm:$0xff]
  %v872 = vld [vmem:[%s3 + $0xc0] sm:$0xff]
  %v873 = vld [vmem:[%s3 + $0xc8] sm:$0xff]
  %v874 = vld [vmem:[%s3 + $0xd0] sm:$0xff]
  %v875 = vld [vmem:[%s3 + $0xd8] sm:$0xff]
  %v876 = vld [vmem:[%s3 + $0xe0] sm:$0xff]
  %v877 = vld [vmem:[%s3 + $0xe8] sm:$0xff]
  %v878 = vld [vmem:[%s3 + $0xf0] sm:$0xff]
  %v879 = vld [vmem:[%s3 + $0xf8] sm:$0xff]
  %v880 = vld [vmem:[%s3 + $0x100] sm:$0xff]
  %v881 = vld [vmem:[%s3 + $0x108] sm:$0xff]
  %v882 = vld [vmem:[%s3 + $0x110] sm:$0xff]
  %v883 = vld [vmem:[%s3 + $0x118] sm:$0xff]
  %v884 = vld [vmem:[%s3 + $0x120] sm:$0xff]
  %v885 = vld [vmem:[%s3 + $0x128] sm:$0xff]
  %v886 = vld [vmem:[%s3 + $0x130] sm:$0xff]
  %v887 = vld [vmem:[%s3 + $0x138] sm:$0xff]
  %v888 = vld [vmem:[%s3 + $0x140] sm:$0xff]
  %v889 = vld [vmem:[%s3 + $0x148] sm:$0xff]
  %v890 = vld [vmem:[%s3 + $0x150] sm:$0xff]
  %v891 = vld [vmem:[%s3 + $0x158] sm:$0xff]
  %v892 = vld [vmem:[%s3 + $0x160] sm:$0xff]
  %v893 = vld [vmem:[%s3 + $0x168] sm:$0xff]
  %v894 = vld [vmem:[%s3 + $0x170] sm:$0xff]
  %v895 = vld [vmem:[%s3 + $0x178] sm:$0xff]
  %v896 = vld [vmem:[%s3 + $0x180] sm:$0xff]
  %v897 = vld [vmem:[%s3 + $0x188] sm:$0xff]
  %v898 = vld [vmem:[%s3 + $0x190] sm:$0xff]
  %v899 = vld [vmem:[%s3 + $0x198] sm:$0xff]
  %v900 = vld [vmem:[%s3 + $0x1a0] sm:$0xff]
  %v901 = vld [vmem:[%s3 + $0x1a8] sm:$0xff]
  %v902 = vld [vmem:[%s3 + $0x1b0] sm:$0xff]
  %v903 = vld [vmem:[%s3 + $0x1b8] sm:$0xff]
  %v904 = vld [vmem:[%s3 + $0x1c0] sm:$0xff]
  %v905 = vld [vmem:[%s3 + $0x1c8] sm:$0xff]
  %v906 = vld [vmem:[%s3 + $0x1d0] sm:$0xff]
  %v907 = vld [vmem:[%s3 + $0x1d8] sm:$0xff]
  %v908 = vld [vmem:[%s3 + $0x1e0] sm:$0xff]
  %v909 = vld [vmem:[%s3 + $0x1e8] sm:$0xff]
  %v910 = vld [vmem:[%s3 + $0x1f0] sm:$0xff]
  %v911 = vld [vmem:[%s3 + $0x1f8] sm:$0xff]
  %s912 = scalar_lea.vmem [#allocation2], 3
  %v913 = vld [vmem:[%s912] ss:$8 sm:$0xf]
  %v915 = vlaneseq
  %v916 = vshrl.u32 %v915, 7
  %v917 = vsub.s32 0, %v916
  %v918 = vrot.slane %v913, %v917
  %v919 = vlaneseq
  %v920 = vshrl.u32 %v919, 7
  %v921 = vsub.s32 1, %v920
  %v922 = vrot.slane %v913, %v921
  %v923 = vlaneseq
  %v924 = vshrl.u32 %v923, 7
  %v925 = vsub.s32 2, %v924
  %v926 = vrot.slane %v913, %v925
  %v927 = vlaneseq
  %v928 = vshrl.u32 %v927, 7
  %v929 = vsub.s32 3, %v928
  %v930 = vrot.slane %v913, %v929
  %935 = vmatprep.subr.mxu0 %v909
  %936 = vmatpush1.msra.mxu0 %v908
  %937 = vmatprep.subr.mxu0 %v905
  %938 = vmatpush1.msra.mxu0 %v904
  %939 = vmatprep.subr.mxu0 %v901
  %940 = vmatpush1.msra.mxu0 %v900
  %941 = vmatprep.subr.mxu0 %v897
  %942 = vmatpush1.msra.mxu0 %v896
  %943 = vmatprep.subr.mxu0 %v893
  %944 = vmatpush1.msra.mxu0 %v892
  %945 = vmatprep.subr.mxu0 %v889
  %946 = vmatpush1.msra.mxu0 %v888
  %947 = vmatprep.subr.mxu0 %v885
  %948 = vmatpush1.msra.mxu0 %v884
  %949 = vmatprep.subr.mxu0 %v881
  %950 = vmatpush1.msra.mxu0 %v880
  %951 = vmatprep.subr.mxu0 %v877
  %952 = vmatpush1.msra.mxu0 %v876
  %953 = vmatprep.subr.mxu0 %v873
  %954 = vmatpush1.msra.mxu0 %v872
  %955 = vmatprep.subr.mxu0 %v869
  %956 = vmatpush1.msra.mxu0 %v868
  %957 = vmatprep.subr.mxu0 %v865
  %958 = vmatpush1.msra.mxu0 %v864
  %959 = vmatprep.subr.mxu0 %v861
  %960 = vmatpush1.msra.mxu0 %v860
  %961 = vmatprep.subr.mxu0 %v857
  %962 = vmatpush1.msra.mxu0 %v856
  %963 = vmatprep.subr.mxu0 %v853
  %964 = vmatpush1.msra.mxu0 %v852
  %965 = vmatprep.subr.mxu0 %v849
  %966 = vmatpush1.msra.mxu0 %v848
  %967 = vmatprep.subr.mxu0 0.0
  %968 = vmatpush2.msra.mxu0 0.0
  %969 = vmatprep.subr.mxu0 0.0
  %970 = vmatpush2.msra.mxu0 0.0
  %971 = vmatprep.subr.mxu0 0.0
  %972 = vmatpush2.msra.mxu0 0.0
  %973 = vmatprep.subr.mxu0 0.0
  %974 = vmatpush2.msra.mxu0 0.0
  %975 = vmatprep.subr.mxu0 0.0
  %976 = vmatpush2.msra.mxu0 0.0
  %977 = vmatprep.subr.mxu0 0.0
  %978 = vmatpush2.msra.mxu0 0.0
  %979 = vmatprep.subr.mxu0 0.0
  %980 = vmatpush2.msra.mxu0 0.0
  %981 = vmatprep.subr.mxu0 0.0
  %982 = vmatpush2.msra.mxu0 0.0
  %983 = vmatprep.subr.mxu0 0.0
  %984 = vmatpush2.msra.mxu0 0.0
  %985 = vmatprep.subr.mxu0 0.0
  %986 = vmatpush2.msra.mxu0 0.0
  %987 = vmatprep.subr.mxu0 0.0
  %988 = vmatpush2.msra.mxu0 0.0
  %989 = vmatprep.subr.mxu0 0.0
  %990 = vmatpush2.msra.mxu0 0.0
  %991 = vmatprep.subr.mxu0 0.0
  %992 = vmatpush2.msra.mxu0 0.0
  %993 = vmatprep.subr.mxu0 0.0
  %994 = vmatpush2.msra.mxu0 0.0
  %995 = vmatprep.subr.mxu0 0.0
  %996 = vmatpush2.msra.mxu0 0.0
  %997 = vmatprep.subr.mxu0 0.0
  %998 = vmatpush2.msra.mxu0 0.0
  %999 = vmatprep.mubr.f32.mxu0 0.0
  %1000 = vmatmul.mubr.f32.gmra.mxu0 %v846
  %v1001 = vpop.f32.mrf.mxu0
  %v1002 = vadd.f32 %v918, %v1001
  %v1003 = vpop.f32.mrf.mxu0
  %v1004 = vadd.f32 %v922, %v1003
  %1005 = vdwg.mxu0
  %1006 = vmatprep.subr.mxu0 %v911
  %1007 = vmatpush1.msra.mxu0 %v910
  %1008 = vmatprep.subr.mxu0 %v907
  %1009 = vmatpush1.msra.mxu0 %v906
  %1010 = vmatprep.subr.mxu0 %v903
  %1011 = vmatpush1.msra.mxu0 %v902
  %1012 = vmatprep.subr.mxu0 %v899
  %1013 = vmatpush1.msra.mxu0 %v898
  %1014 = vmatprep.subr.mxu0 %v895
  %1015 = vmatpush1.msra.mxu0 %v894
  %1016 = vmatprep.subr.mxu0 %v891
  %1017 = vmatpush1.msra.mxu0 %v890
  %1018 = vmatprep.subr.mxu0 %v887
  %1019 = vmatpush1.msra.mxu0 %v886
  %1020 = vmatprep.subr.mxu0 %v883
  %1021 = vmatpush1.msra.mxu0 %v882
  %1022 = vmatprep.subr.mxu0 %v879
  %1023 = vmatpush1.msra.mxu0 %v878
  %1024 = vmatprep.subr.mxu0 %v875
  %1025 = vmatpush1.msra.mxu0 %v874
  %1026 = vmatprep.subr.mxu0 %v871
  %1027 = vmatpush1.msra.mxu0 %v870
  %1028 = vmatprep.subr.mxu0 %v867
  %1029 = vmatpush1.msra.mxu0 %v866
  %1030 = vmatprep.subr.mxu0 %v863
  %1031 = vmatpush1.msra.mxu0 %v862
  %1032 = vmatprep.subr.mxu0 %v859
  %1033 = vmatpush1.msra.mxu0 %v858
  %1034 = vmatprep.subr.mxu0 %v855
  %1035 = vmatpush1.msra.mxu0 %v854
  %1036 = vmatprep.subr.mxu0 %v851
  %1037 = vmatpush1.msra.mxu0 %v850
  %1038 = vmatprep.subr.mxu0 0.0
  %1039 = vmatpush2.msra.mxu0 0.0
  %1040 = vmatprep.subr.mxu0 0.0
  %1041 = vmatpush2.msra.mxu0 0.0
  %1042 = vmatprep.subr.mxu0 0.0
  %1043 = vmatpush2.msra.mxu0 0.0
  %1044 = vmatprep.subr.mxu0 0.0
  %1045 = vmatpush2.msra.mxu0 0.0
  %1046 = vmatprep.subr.mxu0 0.0
  %1047 = vmatpush2.msra.mxu0 0.0
  %1048 = vmatprep.subr.mxu0 0.0
  %1049 = vmatpush2.msra.mxu0 0.0
  %1050 = vmatprep.subr.mxu0 0.0
  %1051 = vmatpush2.msra.mxu0 0.0
  %1052 = vmatprep.subr.mxu0 0.0
  %1053 = vmatpush2.msra.mxu0 0.0
  %1054 = vmatprep.subr.mxu0 0.0
  %1055 = vmatpush2.msra.mxu0 0.0
  %1056 = vmatprep.subr.mxu0 0.0
  %1057 = vmatpush2.msra.mxu0 0.0
  %1058 = vmatprep.subr.mxu0 0.0
  %1059 = vmatpush2.msra.mxu0 0.0
  %1060 = vmatprep.subr.mxu0 0.0
  %1061 = vmatpush2.msra.mxu0 0.0
  %1062 = vmatprep.subr.mxu0 0.0
  %1063 = vmatpush2.msra.mxu0 0.0
  %1064 = vmatprep.subr.mxu0 0.0
  %1065 = vmatpush2.msra.mxu0 0.0
  %1066 = vmatprep.subr.mxu0 0.0
  %1067 = vmatpush2.msra.mxu0 0.0
  %1068 = vmatprep.subr.mxu0 0.0
  %1069 = vmatpush2.msra.mxu0 0.0
  %1070 = vmatprep.mubr.f32.mxu0 0.0
  %1071 = vmatmul.mubr.f32.gmra.mxu0 %v846
  %v1072 = vpop.f32.mrf.mxu0
  %v1073 = vadd.f32 %v926, %v1072
  %v1074 = vpop.f32.mrf.mxu0
  %v1075 = vadd.f32 %v930, %v1074
  %1076 = vdwg.mxu0
  %v1077 = vxor.u32 %v1002, 2147483648
  %v1078 = vmul.f32 %v1077, 1.442695
  %v1079 = vpow.pop %v1078
  %v1080 = vadd.f32 %v1079, 1.0
  %v1081 = vrcp.pop %v1080
  %v1082 = vmul.f32 1.0, %v1081
  %v1083 = vxor.u32 %v1004, 2147483648
  %v1084 = vmul.f32 %v1083, 1.442695
  %v1085 = vpow.pop %v1084
  %v1086 = vadd.f32 %v1085, 1.0
  %v1087 = vrcp.pop %v1086
  %v1088 = vmul.f32 1.0, %v1087
  %v1089 = vtanh.pop %v1073
  %v1090 = vxor.u32 %v1075, 2147483648
  %v1091 = vmul.f32 %v1090, 1.442695
  %v1092 = vpow.pop %v1091
  %v1093 = vadd.f32 %v1092, 1.0
  %v1094 = vrcp.pop %v1093
  %v1095 = vmul.f32 1.0, %v1094
  %v1096 = vmul.f32 %v1088, %v844
  %v1097 = vmul.f32 %v1082, %v1089
  %v1098 = vadd.f32 %v1096, %v1097
  %v1099 = vtanh.pop %v1098
  %v1100 = vmul.f32 %v1095, %v1099
  %1101 = vst [vmem:[#allocation3 + $0x3] sm:$0x1] %v1100
  %v1102 = vld [vmem:[%s3] sm:$0xff]
  %v1103 = vld [vmem:[%s3 + $0x8] sm:$0xff]
  %v1104 = vld [vmem:[%s3 + $0x10] sm:$0xff]
  %v1105 = vld [vmem:[%s3 + $0x18] sm:$0xff]
  %v1106 = vld [vmem:[%s3 + $0x20] sm:$0xff]
  %v1107 = vld [vmem:[%s3 + $0x28] sm:$0xff]
  %v1108 = vld [vmem:[%s3 + $0x30] sm:$0xff]
  %v1109 = vld [vmem:[%s3 + $0x38] sm:$0xff]
  %v1110 = vld [vmem:[%s3 + $0x40] sm:$0xff]
  %v1111 = vld [vmem:[%s3 + $0x48] sm:$0xff]
  %v1112 = vld [vmem:[%s3 + $0x50] sm:$0xff]
  %v1113 = vld [vmem:[%s3 + $0x58] sm:$0xff]
  %v1114 = vld [vmem:[%s3 + $0x60] sm:$0xff]
  %v1115 = vld [vmem:[%s3 + $0x68] sm:$0xff]
  %v1116 = vld [vmem:[%s3 + $0x70] sm:$0xff]
  %v1117 = vld [vmem:[%s3 + $0x78] sm:$0xff]
  %v1118 = vld [vmem:[%s3 + $0x80] sm:$0xff]
  %v1119 = vld [vmem:[%s3 + $0x88] sm:$0xff]
  %v1120 = vld [vmem:[%s3 + $0x90] sm:$0xff]
  %v1121 = vld [vmem:[%s3 + $0x98] sm:$0xff]
  %v1122 = vld [vmem:[%s3 + $0xa0] sm:$0xff]
  %v1123 = vld [vmem:[%s3 + $0xa8] sm:$0xff]
  %v1124 = vld [vmem:[%s3 + $0xb0] sm:$0xff]
  %v1125 = vld [vmem:[%s3 + $0xb8] sm:$0xff]
  %v1126 = vld [vmem:[%s3 + $0xc0] sm:$0xff]
  %v1127 = vld [vmem:[%s3 + $0xc8] sm:$0xff]
  %v1128 = vld [vmem:[%s3 + $0xd0] sm:$0xff]
  %v1129 = vld [vmem:[%s3 + $0xd8] sm:$0xff]
  %v1130 = vld [vmem:[%s3 + $0xe0] sm:$0xff]
  %v1131 = vld [vmem:[%s3 + $0xe8] sm:$0xff]
  %v1132 = vld [vmem:[%s3 + $0xf0] sm:$0xff]
  %v1133 = vld [vmem:[%s3 + $0xf8] sm:$0xff]
  %v1134 = vld [vmem:[%s3 + $0x100] sm:$0xff]
  %v1135 = vld [vmem:[%s3 + $0x108] sm:$0xff]
  %v1136 = vld [vmem:[%s3 + $0x110] sm:$0xff]
  %v1137 = vld [vmem:[%s3 + $0x118] sm:$0xff]
  %v1138 = vld [vmem:[%s3 + $0x120] sm:$0xff]
  %v1139 = vld [vmem:[%s3 + $0x128] sm:$0xff]
  %v1140 = vld [vmem:[%s3 + $0x130] sm:$0xff]
  %v1141 = vld [vmem:[%s3 + $0x138] sm:$0xff]
  %v1142 = vld [vmem:[%s3 + $0x140] sm:$0xff]
  %v1143 = vld [vmem:[%s3 + $0x148] sm:$0xff]
  %v1144 = vld [vmem:[%s3 + $0x150] sm:$0xff]
  %v1145 = vld [vmem:[%s3 + $0x158] sm:$0xff]
  %v1146 = vld [vmem:[%s3 + $0x160] sm:$0xff]
  %v1147 = vld [vmem:[%s3 + $0x168] sm:$0xff]
  %v1148 = vld [vmem:[%s3 + $0x170] sm:$0xff]
  %v1149 = vld [vmem:[%s3 + $0x178] sm:$0xff]
  %v1150 = vld [vmem:[%s3 + $0x180] sm:$0xff]
  %v1151 = vld [vmem:[%s3 + $0x188] sm:$0xff]
  %v1152 = vld [vmem:[%s3 + $0x190] sm:$0xff]
  %v1153 = vld [vmem:[%s3 + $0x198] sm:$0xff]
  %v1154 = vld [vmem:[%s3 + $0x1a0] sm:$0xff]
  %v1155 = vld [vmem:[%s3 + $0x1a8] sm:$0xff]
  %v1156 = vld [vmem:[%s3 + $0x1b0] sm:$0xff]
  %v1157 = vld [vmem:[%s3 + $0x1b8] sm:$0xff]
  %v1158 = vld [vmem:[%s3 + $0x1c0] sm:$0xff]
  %v1159 = vld [vmem:[%s3 + $0x1c8] sm:$0xff]
  %v1160 = vld [vmem:[%s3 + $0x1d0] sm:$0xff]
  %v1161 = vld [vmem:[%s3 + $0x1d8] sm:$0xff]
  %v1162 = vld [vmem:[%s3 + $0x1e0] sm:$0xff]
  %v1163 = vld [vmem:[%s3 + $0x1e8] sm:$0xff]
  %v1164 = vld [vmem:[%s3 + $0x1f0] sm:$0xff]
  %v1165 = vld [vmem:[%s3 + $0x1f8] sm:$0xff]
  %s1166 = scalar_lea.vmem [#allocation2], 4
  %v1167 = vld [vmem:[%s1166] ss:$8 sm:$0xf]
  %v1169 = vlaneseq
  %v1170 = vshrl.u32 %v1169, 7
  %v1171 = vsub.s32 0, %v1170
  %v1172 = vrot.slane %v1167, %v1171
  %v1173 = vlaneseq
  %v1174 = vshrl.u32 %v1173, 7
  %v1175 = vsub.s32 1, %v1174
  %v1176 = vrot.slane %v1167, %v1175
  %v1177 = vlaneseq
  %v1178 = vshrl.u32 %v1177, 7
  %v1179 = vsub.s32 2, %v1178
  %v1180 = vrot.slane %v1167, %v1179
  %v1181 = vlaneseq
  %v1182 = vshrl.u32 %v1181, 7
  %v1183 = vsub.s32 3, %v1182
  %v1184 = vrot.slane %v1167, %v1183
  %1189 = vmatprep.subr.mxu0 %v1163
  %1190 = vmatpush1.msra.mxu0 %v1162
  %1191 = vmatprep.subr.mxu0 %v1159
  %1192 = vmatpush1.msra.mxu0 %v1158
  %1193 = vmatprep.subr.mxu0 %v1155
  %1194 = vmatpush1.msra.mxu0 %v1154
  %1195 = vmatprep.subr.mxu0 %v1151
  %1196 = vmatpush1.msra.mxu0 %v1150
  %1197 = vmatprep.subr.mxu0 %v1147
  %1198 = vmatpush1.msra.mxu0 %v1146
  %1199 = vmatprep.subr.mxu0 %v1143
  %1200 = vmatpush1.msra.mxu0 %v1142
  %1201 = vmatprep.subr.mxu0 %v1139
  %1202 = vmatpush1.msra.mxu0 %v1138
  %1203 = vmatprep.subr.mxu0 %v1135
  %1204 = vmatpush1.msra.mxu0 %v1134
  %1205 = vmatprep.subr.mxu0 %v1131
  %1206 = vmatpush1.msra.mxu0 %v1130
  %1207 = vmatprep.subr.mxu0 %v1127
  %1208 = vmatpush1.msra.mxu0 %v1126
  %1209 = vmatprep.subr.mxu0 %v1123
  %1210 = vmatpush1.msra.mxu0 %v1122
  %1211 = vmatprep.subr.mxu0 %v1119
  %1212 = vmatpush1.msra.mxu0 %v1118
  %1213 = vmatprep.subr.mxu0 %v1115
  %1214 = vmatpush1.msra.mxu0 %v1114
  %1215 = vmatprep.subr.mxu0 %v1111
  %1216 = vmatpush1.msra.mxu0 %v1110
  %1217 = vmatprep.subr.mxu0 %v1107
  %1218 = vmatpush1.msra.mxu0 %v1106
  %1219 = vmatprep.subr.mxu0 %v1103
  %1220 = vmatpush1.msra.mxu0 %v1102
  %1221 = vmatprep.subr.mxu0 0.0
  %1222 = vmatpush2.msra.mxu0 0.0
  %1223 = vmatprep.subr.mxu0 0.0
  %1224 = vmatpush2.msra.mxu0 0.0
  %1225 = vmatprep.subr.mxu0 0.0
  %1226 = vmatpush2.msra.mxu0 0.0
  %1227 = vmatprep.subr.mxu0 0.0
  %1228 = vmatpush2.msra.mxu0 0.0
  %1229 = vmatprep.subr.mxu0 0.0
  %1230 = vmatpush2.msra.mxu0 0.0
  %1231 = vmatprep.subr.mxu0 0.0
  %1232 = vmatpush2.msra.mxu0 0.0
  %1233 = vmatprep.subr.mxu0 0.0
  %1234 = vmatpush2.msra.mxu0 0.0
  %1235 = vmatprep.subr.mxu0 0.0
  %1236 = vmatpush2.msra.mxu0 0.0
  %1237 = vmatprep.subr.mxu0 0.0
  %1238 = vmatpush2.msra.mxu0 0.0
  %1239 = vmatprep.subr.mxu0 0.0
  %1240 = vmatpush2.msra.mxu0 0.0
  %1241 = vmatprep.subr.mxu0 0.0
  %1242 = vmatpush2.msra.mxu0 0.0
  %1243 = vmatprep.subr.mxu0 0.0
  %1244 = vmatpush2.msra.mxu0 0.0
  %1245 = vmatprep.subr.mxu0 0.0
  %1246 = vmatpush2.msra.mxu0 0.0
  %1247 = vmatprep.subr.mxu0 0.0
  %1248 = vmatpush2.msra.mxu0 0.0
  %1249 = vmatprep.subr.mxu0 0.0
  %1250 = vmatpush2.msra.mxu0 0.0
  %1251 = vmatprep.subr.mxu0 0.0
  %1252 = vmatpush2.msra.mxu0 0.0
  %1253 = vmatprep.mubr.f32.mxu0 0.0
  %1254 = vmatmul.mubr.f32.gmra.mxu0 %v1100
  %v1255 = vpop.f32.mrf.mxu0
  %v1256 = vadd.f32 %v1172, %v1255
  %v1257 = vpop.f32.mrf.mxu0
  %v1258 = vadd.f32 %v1176, %v1257
  %1259 = vdwg.mxu0
  %1260 = vmatprep.subr.mxu0 %v1165
  %1261 = vmatpush1.msra.mxu0 %v1164
  %1262 = vmatprep.subr.mxu0 %v1161
  %1263 = vmatpush1.msra.mxu0 %v1160
  %1264 = vmatprep.subr.mxu0 %v1157
  %1265 = vmatpush1.msra.mxu0 %v1156
  %1266 = vmatprep.subr.mxu0 %v1153
  %1267 = vmatpush1.msra.mxu0 %v1152
  %1268 = vmatprep.subr.mxu0 %v1149
  %1269 = vmatpush1.msra.mxu0 %v1148
  %1270 = vmatprep.subr.mxu0 %v1145
  %1271 = vmatpush1.msra.mxu0 %v1144
  %1272 = vmatprep.subr.mxu0 %v1141
  %1273 = vmatpush1.msra.mxu0 %v1140
  %1274 = vmatprep.subr.mxu0 %v1137
  %1275 = vmatpush1.msra.mxu0 %v1136
  %1276 = vmatprep.subr.mxu0 %v1133
  %1277 = vmatpush1.msra.mxu0 %v1132
  %1278 = vmatprep.subr.mxu0 %v1129
  %1279 = vmatpush1.msra.mxu0 %v1128
  %1280 = vmatprep.subr.mxu0 %v1125
  %1281 = vmatpush1.msra.mxu0 %v1124
  %1282 = vmatprep.subr.mxu0 %v1121
  %1283 = vmatpush1.msra.mxu0 %v1120
  %1284 = vmatprep.subr.mxu0 %v1117
  %1285 = vmatpush1.msra.mxu0 %v1116
  %1286 = vmatprep.subr.mxu0 %v1113
  %1287 = vmatpush1.msra.mxu0 %v1112
  %1288 = vmatprep.subr.mxu0 %v1109
  %1289 = vmatpush1.msra.mxu0 %v1108
  %1290 = vmatprep.subr.mxu0 %v1105
  %1291 = vmatpush1.msra.mxu0 %v1104
  %1292 = vmatprep.subr.mxu0 0.0
  %1293 = vmatpush2.msra.mxu0 0.0
  %1294 = vmatprep.subr.mxu0 0.0
  %1295 = vmatpush2.msra.mxu0 0.0
  %1296 = vmatprep.subr.mxu0 0.0
  %1297 = vmatpush2.msra.mxu0 0.0
  %1298 = vmatprep.subr.mxu0 0.0
  %1299 = vmatpush2.msra.mxu0 0.0
  %1300 = vmatprep.subr.mxu0 0.0
  %1301 = vmatpush2.msra.mxu0 0.0
  %1302 = vmatprep.subr.mxu0 0.0
  %1303 = vmatpush2.msra.mxu0 0.0
  %1304 = vmatprep.subr.mxu0 0.0
  %1305 = vmatpush2.msra.mxu0 0.0
  %1306 = vmatprep.subr.mxu0 0.0
  %1307 = vmatpush2.msra.mxu0 0.0
  %1308 = vmatprep.subr.mxu0 0.0
  %1309 = vmatpush2.msra.mxu0 0.0
  %1310 = vmatprep.subr.mxu0 0.0
  %1311 = vmatpush2.msra.mxu0 0.0
  %1312 = vmatprep.subr.mxu0 0.0
  %1313 = vmatpush2.msra.mxu0 0.0
  %1314 = vmatprep.subr.mxu0 0.0
  %1315 = vmatpush2.msra.mxu0 0.0
  %1316 = vmatprep.subr.mxu0 0.0
  %1317 = vmatpush2.msra.mxu0 0.0
  %1318 = vmatprep.subr.mxu0 0.0
  %1319 = vmatpush2.msra.mxu0 0.0
  %1320 = vmatprep.subr.mxu0 0.0
  %1321 = vmatpush2.msra.mxu0 0.0
  %1322 = vmatprep.subr.mxu0 0.0
  %1323 = vmatpush2.msra.mxu0 0.0
  %1324 = vmatprep.mubr.f32.mxu0 0.0
  %1325 = vmatmul.mubr.f32.gmra.mxu0 %v1100
  %v1326 = vpop.f32.mrf.mxu0
  %v1327 = vadd.f32 %v1180, %v1326
  %v1328 = vpop.f32.mrf.mxu0
  %v1329 = vadd.f32 %v1184, %v1328
  %1330 = vdwg.mxu0
  %v1331 = vxor.u32 %v1256, 2147483648
  %v1332 = vmul.f32 %v1331, 1.442695
  %v1333 = vpow.pop %v1332
  %v1334 = vadd.f32 %v1333, 1.0
  %v1335 = vrcp.pop %v1334
  %v1336 = vmul.f32 1.0, %v1335
  %v1337 = vxor.u32 %v1258, 2147483648
  %v1338 = vmul.f32 %v1337, 1.442695
  %v1339 = vpow.pop %v1338
  %v1340 = vadd.f32 %v1339, 1.0
  %v1341 = vrcp.pop %v1340
  %v1342 = vmul.f32 1.0, %v1341
  %v1343 = vtanh.pop %v1327
  %v1344 = vxor.u32 %v1329, 2147483648
  %v1345 = vmul.f32 %v1344, 1.442695
  %v1346 = vpow.pop %v1345
  %v1347 = vadd.f32 %v1346, 1.0
  %v1348 = vrcp.pop %v1347
  %v1349 = vmul.f32 1.0, %v1348
  %v1350 = vmul.f32 %v1342, %v1098
  %v1351 = vmul.f32 %v1336, %v1343
  %v1352 = vadd.f32 %v1350, %v1351
  %v1353 = vtanh.pop %v1352
  %v1354 = vmul.f32 %v1349, %v1353
  %1355 = vst [vmem:[#allocation3 + $0x4] sm:$0x1] %v1354
  %v1356 = vld [vmem:[%s3] sm:$0xff]
  %v1357 = vld [vmem:[%s3 + $0x8] sm:$0xff]
  %v1358 = vld [vmem:[%s3 + $0x10] sm:$0xff]
  %v1359 = vld [vmem:[%s3 + $0x18] sm:$0xff]
  %v1360 = vld [vmem:[%s3 + $0x20] sm:$0xff]
  %v1361 = vld [vmem:[%s3 + $0x28] sm:$0xff]
  %v1362 = vld [vmem:[%s3 + $0x30] sm:$0xff]
  %v1363 = vld [vmem:[%s3 + $0x38] sm:$0xff]
  %v1364 = vld [vmem:[%s3 + $0x40] sm:$0xff]
  %v1365 = vld [vmem:[%s3 + $0x48] sm:$0xff]
  %v1366 = vld [vmem:[%s3 + $0x50] sm:$0xff]
  %v1367 = vld [vmem:[%s3 + $0x58] sm:$0xff]
  %v1368 = vld [vmem:[%s3 + $0x60] sm:$0xff]
  %v1369 = vld [vmem:[%s3 + $0x68] sm:$0xff]
  %v1370 = vld [vmem:[%s3 + $0x70] sm:$0xff]
  %v1371 = vld [vmem:[%s3 + $0x78] sm:$0xff]
  %v1372 = vld [vmem:[%s3 + $0x80] sm:$0xff]
  %v1373 = vld [vmem:[%s3 + $0x88] sm:$0xff]
  %v1374 = vld [vmem:[%s3 + $0x90] sm:$0xff]
  %v1375 = vld [vmem:[%s3 + $0x98] sm:$0xff]
  %v1376 = vld [vmem:[%s3 + $0xa0] sm:$0xff]
  %v1377 = vld [vmem:[%s3 + $0xa8] sm:$0xff]
  %v1378 = vld [vmem:[%s3 + $0xb0] sm:$0xff]
  %v1379 = vld [vmem:[%s3 + $0xb8] sm:$0xff]
  %v1380 = vld [vmem:[%s3 + $0xc0] sm:$0xff]
  %v1381 = vld [vmem:[%s3 + $0xc8] sm:$0xff]
  %v1382 = vld [vmem:[%s3 + $0xd0] sm:$0xff]
  %v1383 = vld [vmem:[%s3 + $0xd8] sm:$0xff]
  %v1384 = vld [vmem:[%s3 + $0xe0] sm:$0xff]
  %v1385 = vld [vmem:[%s3 + $0xe8] sm:$0xff]
  %v1386 = vld [vmem:[%s3 + $0xf0] sm:$0xff]
  %v1387 = vld [vmem:[%s3 + $0xf8] sm:$0xff]
  %v1388 = vld [vmem:[%s3 + $0x100] sm:$0xff]
  %v1389 = vld [vmem:[%s3 + $0x108] sm:$0xff]
  %v1390 = vld [vmem:[%s3 + $0x110] sm:$0xff]
  %v1391 = vld [vmem:[%s3 + $0x118] sm:$0xff]
  %v1392 = vld [vmem:[%s3 + $0x120] sm:$0xff]
  %v1393 = vld [vmem:[%s3 + $0x128] sm:$0xff]
  %v1394 = vld [vmem:[%s3 + $0x130] sm:$0xff]
  %v1395 = vld [vmem:[%s3 + $0x138] sm:$0xff]
  %v1396 = vld [vmem:[%s3 + $0x140] sm:$0xff]
  %v1397 = vld [vmem:[%s3 + $0x148] sm:$0xff]
  %v1398 = vld [vmem:[%s3 + $0x150] sm:$0xff]
  %v1399 = vld [vmem:[%s3 + $0x158] sm:$0xff]
  %v1400 = vld [vmem:[%s3 + $0x160] sm:$0xff]
  %v1401 = vld [vmem:[%s3 + $0x168] sm:$0xff]
  %v1402 = vld [vmem:[%s3 + $0x170] sm:$0xff]
  %v1403 = vld [vmem:[%s3 + $0x178] sm:$0xff]
  %v1404 = vld [vmem:[%s3 + $0x180] sm:$0xff]
  %v1405 = vld [vmem:[%s3 + $0x188] sm:$0xff]
  %v1406 = vld [vmem:[%s3 + $0x190] sm:$0xff]
  %v1407 = vld [vmem:[%s3 + $0x198] sm:$0xff]
  %v1408 = vld [vmem:[%s3 + $0x1a0] sm:$0xff]
  %v1409 = vld [vmem:[%s3 + $0x1a8] sm:$0xff]
  %v1410 = vld [vmem:[%s3 + $0x1b0] sm:$0xff]
  %v1411 = vld [vmem:[%s3 + $0x1b8] sm:$0xff]
  %v1412 = vld [vmem:[%s3 + $0x1c0] sm:$0xff]
  %v1413 = vld [vmem:[%s3 + $0x1c8] sm:$0xff]
  %v1414 = vld [vmem:[%s3 + $0x1d0] sm:$0xff]
  %v1415 = vld [vmem:[%s3 + $0x1d8] sm:$0xff]
  %v1416 = vld [vmem:[%s3 + $0x1e0] sm:$0xff]
  %v1417 = vld [vmem:[%s3 + $0x1e8] sm:$0xff]
  %v1418 = vld [vmem:[%s3 + $0x1f0] sm:$0xff]
  %v1419 = vld [vmem:[%s3 + $0x1f8] sm:$0xff]
  %s1420 = scalar_lea.vmem [#allocation2], 5
  %v1421 = vld [vmem:[%s1420] ss:$8 sm:$0xf]
  %v1423 = vlaneseq
  %v1424 = vshrl.u32 %v1423, 7
  %v1425 = vsub.s32 0, %v1424
  %v1426 = vrot.slane %v1421, %v1425
  %v1427 = vlaneseq
  %v1428 = vshrl.u32 %v1427, 7
  %v1429 = vsub.s32 1, %v1428
  %v1430 = vrot.slane %v1421, %v1429
  %v1431 = vlaneseq
  %v1432 = vshrl.u32 %v1431, 7
  %v1433 = vsub.s32 2, %v1432
  %v1434 = vrot.slane %v1421, %v1433
  %v1435 = vlaneseq
  %v1436 = vshrl.u32 %v1435, 7
  %v1437 = vsub.s32 3, %v1436
  %v1438 = vrot.slane %v1421, %v1437
  %1443 = vmatprep.subr.mxu0 %v1417
  %1444 = vmatpush1.msra.mxu0 %v1416
  %1445 = vmatprep.subr.mxu0 %v1413
  %1446 = vmatpush1.msra.mxu0 %v1412
  %1447 = vmatprep.subr.mxu0 %v1409
  %1448 = vmatpush1.msra.mxu0 %v1408
  %1449 = vmatprep.subr.mxu0 %v1405
  %1450 = vmatpush1.msra.mxu0 %v1404
  %1451 = vmatprep.subr.mxu0 %v1401
  %1452 = vmatpush1.msra.mxu0 %v1400
  %1453 = vmatprep.subr.mxu0 %v1397
  %1454 = vmatpush1.msra.mxu0 %v1396
  %1455 = vmatprep.subr.mxu0 %v1393
  %1456 = vmatpush1.msra.mxu0 %v1392
  %1457 = vmatprep.subr.mxu0 %v1389
  %1458 = vmatpush1.msra.mxu0 %v1388
  %1459 = vmatprep.subr.mxu0 %v1385
  %1460 = vmatpush1.msra.mxu0 %v1384
  %1461 = vmatprep.subr.mxu0 %v1381
  %1462 = vmatpush1.msra.mxu0 %v1380
  %1463 = vmatprep.subr.mxu0 %v1377
  %1464 = vmatpush1.msra.mxu0 %v1376
  %1465 = vmatprep.subr.mxu0 %v1373
  %1466 = vmatpush1.msra.mxu0 %v1372
  %1467 = vmatprep.subr.mxu0 %v1369
  %1468 = vmatpush1.msra.mxu0 %v1368
  %1469 = vmatprep.subr.mxu0 %v1365
  %1470 = vmatpush1.msra.mxu0 %v1364
  %1471 = vmatprep.subr.mxu0 %v1361
  %1472 = vmatpush1.msra.mxu0 %v1360
  %1473 = vmatprep.subr.mxu0 %v1357
  %1474 = vmatpush1.msra.mxu0 %v1356
  %1475 = vmatprep.subr.mxu0 0.0
  %1476 = vmatpush2.msra.mxu0 0.0
  %1477 = vmatprep.subr.mxu0 0.0
  %1478 = vmatpush2.msra.mxu0 0.0
  %1479 = vmatprep.subr.mxu0 0.0
  %1480 = vmatpush2.msra.mxu0 0.0
  %1481 = vmatprep.subr.mxu0 0.0
  %1482 = vmatpush2.msra.mxu0 0.0
  %1483 = vmatprep.subr.mxu0 0.0
  %1484 = vmatpush2.msra.mxu0 0.0
  %1485 = vmatprep.subr.mxu0 0.0
  %1486 = vmatpush2.msra.mxu0 0.0
  %1487 = vmatprep.subr.mxu0 0.0
  %1488 = vmatpush2.msra.mxu0 0.0
  %1489 = vmatprep.subr.mxu0 0.0
  %1490 = vmatpush2.msra.mxu0 0.0
  %1491 = vmatprep.subr.mxu0 0.0
  %1492 = vmatpush2.msra.mxu0 0.0
  %1493 = vmatprep.subr.mxu0 0.0
  %1494 = vmatpush2.msra.mxu0 0.0
  %1495 = vmatprep.subr.mxu0 0.0
  %1496 = vmatpush2.msra.mxu0 0.0
  %1497 = vmatprep.subr.mxu0 0.0
  %1498 = vmatpush2.msra.mxu0 0.0
  %1499 = vmatprep.subr.mxu0 0.0
  %1500 = vmatpush2.msra.mxu0 0.0
  %1501 = vmatprep.subr.mxu0 0.0
  %1502 = vmatpush2.msra.mxu0 0.0
  %1503 = vmatprep.subr.mxu0 0.0
  %1504 = vmatpush2.msra.mxu0 0.0
  %1505 = vmatprep.subr.mxu0 0.0
  %1506 = vmatpush2.msra.mxu0 0.0
  %1507 = vmatprep.mubr.f32.mxu0 0.0
  %1508 = vmatmul.mubr.f32.gmra.mxu0 %v1354
  %v1509 = vpop.f32.mrf.mxu0
  %v1510 = vadd.f32 %v1426, %v1509
  %v1511 = vpop.f32.mrf.mxu0
  %v1512 = vadd.f32 %v1430, %v1511
  %1513 = vdwg.mxu0
  %1514 = vmatprep.subr.mxu0 %v1419
  %1515 = vmatpush1.msra.mxu0 %v1418
  %1516 = vmatprep.subr.mxu0 %v1415
  %1517 = vmatpush1.msra.mxu0 %v1414
  %1518 = vmatprep.subr.mxu0 %v1411
  %1519 = vmatpush1.msra.mxu0 %v1410
  %1520 = vmatprep.subr.mxu0 %v1407
  %1521 = vmatpush1.msra.mxu0 %v1406
  %1522 = vmatprep.subr.mxu0 %v1403
  %1523 = vmatpush1.msra.mxu0 %v1402
  %1524 = vmatprep.subr.mxu0 %v1399
  %1525 = vmatpush1.msra.mxu0 %v1398
  %1526 = vmatprep.subr.mxu0 %v1395
  %1527 = vmatpush1.msra.mxu0 %v1394
  %1528 = vmatprep.subr.mxu0 %v1391
  %1529 = vmatpush1.msra.mxu0 %v1390
  %1530 = vmatprep.subr.mxu0 %v1387
  %1531 = vmatpush1.msra.mxu0 %v1386
  %1532 = vmatprep.subr.mxu0 %v1383
  %1533 = vmatpush1.msra.mxu0 %v1382
  %1534 = vmatprep.subr.mxu0 %v1379
  %1535 = vmatpush1.msra.mxu0 %v1378
  %1536 = vmatprep.subr.mxu0 %v1375
  %1537 = vmatpush1.msra.mxu0 %v1374
  %1538 = vmatprep.subr.mxu0 %v1371
  %1539 = vmatpush1.msra.mxu0 %v1370
  %1540 = vmatprep.subr.mxu0 %v1367
  %1541 = vmatpush1.msra.mxu0 %v1366
  %1542 = vmatprep.subr.mxu0 %v1363
  %1543 = vmatpush1.msra.mxu0 %v1362
  %1544 = vmatprep.subr.mxu0 %v1359
  %1545 = vmatpush1.msra.mxu0 %v1358
  %1546 = vmatprep.subr.mxu0 0.0
  %1547 = vmatpush2.msra.mxu0 0.0
  %1548 = vmatprep.subr.mxu0 0.0
  %1549 = vmatpush2.msra.mxu0 0.0
  %1550 = vmatprep.subr.mxu0 0.0
  %1551 = vmatpush2.msra.mxu0 0.0
  %1552 = vmatprep.subr.mxu0 0.0
  %1553 = vmatpush2.msra.mxu0 0.0
  %1554 = vmatprep.subr.mxu0 0.0
  %1555 = vmatpush2.msra.mxu0 0.0
  %1556 = vmatprep.subr.mxu0 0.0
  %1557 = vmatpush2.msra.mxu0 0.0
  %1558 = vmatprep.subr.mxu0 0.0
  %1559 = vmatpush2.msra.mxu0 0.0
  %1560 = vmatprep.subr.mxu0 0.0
  %1561 = vmatpush2.msra.mxu0 0.0
  %1562 = vmatprep.subr.mxu0 0.0
  %1563 = vmatpush2.msra.mxu0 0.0
  %1564 = vmatprep.subr.mxu0 0.0
  %1565 = vmatpush2.msra.mxu0 0.0
  %1566 = vmatprep.subr.mxu0 0.0
  %1567 = vmatpush2.msra.mxu0 0.0
  %1568 = vmatprep.subr.mxu0 0.0
  %1569 = vmatpush2.msra.mxu0 0.0
  %1570 = vmatprep.subr.mxu0 0.0
  %1571 = vmatpush2.msra.mxu0 0.0
  %1572 = vmatprep.subr.mxu0 0.0
  %1573 = vmatpush2.msra.mxu0 0.0
  %1574 = vmatprep.subr.mxu0 0.0
  %1575 = vmatpush2.msra.mxu0 0.0
  %1576 = vmatprep.subr.mxu0 0.0
  %1577 = vmatpush2.msra.mxu0 0.0
  %1578 = vmatprep.mubr.f32.mxu0 0.0
  %1579 = vmatmul.mubr.f32.gmra.mxu0 %v1354
  %v1580 = vpop.f32.mrf.mxu0
  %v1581 = vadd.f32 %v1434, %v1580
  %v1582 = vpop.f32.mrf.mxu0
  %v1583 = vadd.f32 %v1438, %v1582
  %1584 = vdwg.mxu0
  %v1585 = vxor.u32 %v1510, 2147483648
  %v1586 = vmul.f32 %v1585, 1.442695
  %v1587 = vpow.pop %v1586
  %v1588 = vadd.f32 %v1587, 1.0
  %v1589 = vrcp.pop %v1588
  %v1590 = vmul.f32 1.0, %v1589
  %v1591 = vxor.u32 %v1512, 2147483648
  %v1592 = vmul.f32 %v1591, 1.442695
  %v1593 = vpow.pop %v1592
  %v1594 = vadd.f32 %v1593, 1.0
  %v1595 = vrcp.pop %v1594
  %v1596 = vmul.f32 1.0, %v1595
  %v1597 = vtanh.pop %v1581
  %v1598 = vxor.u32 %v1583, 2147483648
  %v1599 = vmul.f32 %v1598, 1.442695
  %v1600 = vpow.pop %v1599
  %v1601 = vadd.f32 %v1600, 1.0
  %v1602 = vrcp.pop %v1601
  %v1603 = vmul.f32 1.0, %v1602
  %v1604 = vmul.f32 %v1596, %v1352
  %v1605 = vmul.f32 %v1590, %v1597
  %v1606 = vadd.f32 %v1604, %v1605
  %v1607 = vtanh.pop %v1606
  %v1608 = vmul.f32 %v1603, %v1607
  %1609 = vst [vmem:[#allocation3 + $0x5] sm:$0x1] %v1608
  %v1610 = vld [vmem:[%s3] sm:$0xff]
  %v1611 = vld [vmem:[%s3 + $0x8] sm:$0xff]
  %v1612 = vld [vmem:[%s3 + $0x10] sm:$0xff]
  %v1613 = vld [vmem:[%s3 + $0x18] sm:$0xff]
  %v1614 = vld [vmem:[%s3 + $0x20] sm:$0xff]
  %v1615 = vld [vmem:[%s3 + $0x28] sm:$0xff]
  %v1616 = vld [vmem:[%s3 + $0x30] sm:$0xff]
  %v1617 = vld [vmem:[%s3 + $0x38] sm:$0xff]
  %v1618 = vld [vmem:[%s3 + $0x40] sm:$0xff]
  %v1619 = vld [vmem:[%s3 + $0x48] sm:$0xff]
  %v1620 = vld [vmem:[%s3 + $0x50] sm:$0xff]
  %v1621 = vld [vmem:[%s3 + $0x58] sm:$0xff]
  %v1622 = vld [vmem:[%s3 + $0x60] sm:$0xff]
  %v1623 = vld [vmem:[%s3 + $0x68] sm:$0xff]
  %v1624 = vld [vmem:[%s3 + $0x70] sm:$0xff]
  %v1625 = vld [vmem:[%s3 + $0x78] sm:$0xff]
  %v1626 = vld [vmem:[%s3 + $0x80] sm:$0xff]
  %v1627 = vld [vmem:[%s3 + $0x88] sm:$0xff]
  %v1628 = vld [vmem:[%s3 + $0x90] sm:$0xff]
  %v1629 = vld [vmem:[%s3 + $0x98] sm:$0xff]
  %v1630 = vld [vmem:[%s3 + $0xa0] sm:$0xff]
  %v1631 = vld [vmem:[%s3 + $0xa8] sm:$0xff]
  %v1632 = vld [vmem:[%s3 + $0xb0] sm:$0xff]
  %v1633 = vld [vmem:[%s3 + $0xb8] sm:$0xff]
  %v1634 = vld [vmem:[%s3 + $0xc0] sm:$0xff]
  %v1635 = vld [vmem:[%s3 + $0xc8] sm:$0xff]
  %v1636 = vld [vmem:[%s3 + $0xd0] sm:$0xff]
  %v1637 = vld [vmem:[%s3 + $0xd8] sm:$0xff]
  %v1638 = vld [vmem:[%s3 + $0xe0] sm:$0xff]
  %v1639 = vld [vmem:[%s3 + $0xe8] sm:$0xff]
  %v1640 = vld [vmem:[%s3 + $0xf0] sm:$0xff]
  %v1641 = vld [vmem:[%s3 + $0xf8] sm:$0xff]
  %v1642 = vld [vmem:[%s3 + $0x100] sm:$0xff]
  %v1643 = vld [vmem:[%s3 + $0x108] sm:$0xff]
  %v1644 = vld [vmem:[%s3 + $0x110] sm:$0xff]
  %v1645 = vld [vmem:[%s3 + $0x118] sm:$0xff]
  %v1646 = vld [vmem:[%s3 + $0x120] sm:$0xff]
  %v1647 = vld [vmem:[%s3 + $0x128] sm:$0xff]
  %v1648 = vld [vmem:[%s3 + $0x130] sm:$0xff]
  %v1649 = vld [vmem:[%s3 + $0x138] sm:$0xff]
  %v1650 = vld [vmem:[%s3 + $0x140] sm:$0xff]
  %v1651 = vld [vmem:[%s3 + $0x148] sm:$0xff]
  %v1652 = vld [vmem:[%s3 + $0x150] sm:$0xff]
  %v1653 = vld [vmem:[%s3 + $0x158] sm:$0xff]
  %v1654 = vld [vmem:[%s3 + $0x160] sm:$0xff]
  %v1655 = vld [vmem:[%s3 + $0x168] sm:$0xff]
  %v1656 = vld [vmem:[%s3 + $0x170] sm:$0xff]
  %v1657 = vld [vmem:[%s3 + $0x178] sm:$0xff]
  %v1658 = vld [vmem:[%s3 + $0x180] sm:$0xff]
  %v1659 = vld [vmem:[%s3 + $0x188] sm:$0xff]
  %v1660 = vld [vmem:[%s3 + $0x190] sm:$0xff]
  %v1661 = vld [vmem:[%s3 + $0x198] sm:$0xff]
  %v1662 = vld [vmem:[%s3 + $0x1a0] sm:$0xff]
  %v1663 = vld [vmem:[%s3 + $0x1a8] sm:$0xff]
  %v1664 = vld [vmem:[%s3 + $0x1b0] sm:$0xff]
  %v1665 = vld [vmem:[%s3 + $0x1b8] sm:$0xff]
  %v1666 = vld [vmem:[%s3 + $0x1c0] sm:$0xff]
  %v1667 = vld [vmem:[%s3 + $0x1c8] sm:$0xff]
  %v1668 = vld [vmem:[%s3 + $0x1d0] sm:$0xff]
  %v1669 = vld [vmem:[%s3 + $0x1d8] sm:$0xff]
  %v1670 = vld [vmem:[%s3 + $0x1e0] sm:$0xff]
  %v1671 = vld [vmem:[%s3 + $0x1e8] sm:$0xff]
  %v1672 = vld [vmem:[%s3 + $0x1f0] sm:$0xff]
  %v1673 = vld [vmem:[%s3 + $0x1f8] sm:$0xff]
  %s1674 = scalar_lea.vmem [#allocation2], 6
  %v1675 = vld [vmem:[%s1674] ss:$8 sm:$0xf]
  %v1677 = vlaneseq
  %v1678 = vshrl.u32 %v1677, 7
  %v1679 = vsub.s32 0, %v1678
  %v1680 = vrot.slane %v1675, %v1679
  %v1681 = vlaneseq
  %v1682 = vshrl.u32 %v1681, 7
  %v1683 = vsub.s32 1, %v1682
  %v1684 = vrot.slane %v1675, %v1683
  %v1685 = vlaneseq
  %v1686 = vshrl.u32 %v1685, 7
  %v1687 = vsub.s32 2, %v1686
  %v1688 = vrot.slane %v1675, %v1687
  %v1689 = vlaneseq
  %v1690 = vshrl.u32 %v1689, 7
  %v1691 = vsub.s32 3, %v1690
  %v1692 = vrot.slane %v1675, %v1691
  %1697 = vmatprep.subr.mxu0 %v1671
  %1698 = vmatpush1.msra.mxu0 %v1670
  %1699 = vmatprep.subr.mxu0 %v1667
  %1700 = vmatpush1.msra.mxu0 %v1666
  %1701 = vmatprep.subr.mxu0 %v1663
  %1702 = vmatpush1.msra.mxu0 %v1662
  %1703 = vmatprep.subr.mxu0 %v1659
  %1704 = vmatpush1.msra.mxu0 %v1658
  %1705 = vmatprep.subr.mxu0 %v1655
  %1706 = vmatpush1.msra.mxu0 %v1654
  %1707 = vmatprep.subr.mxu0 %v1651
  %1708 = vmatpush1.msra.mxu0 %v1650
  %1709 = vmatprep.subr.mxu0 %v1647
  %1710 = vmatpush1.msra.mxu0 %v1646
  %1711 = vmatprep.subr.mxu0 %v1643
  %1712 = vmatpush1.msra.mxu0 %v1642
  %1713 = vmatprep.subr.mxu0 %v1639
  %1714 = vmatpush1.msra.mxu0 %v1638
  %1715 = vmatprep.subr.mxu0 %v1635
  %1716 = vmatpush1.msra.mxu0 %v1634
  %1717 = vmatprep.subr.mxu0 %v1631
  %1718 = vmatpush1.msra.mxu0 %v1630
  %1719 = vmatprep.subr.mxu0 %v1627
  %1720 = vmatpush1.msra.mxu0 %v1626
  %1721 = vmatprep.subr.mxu0 %v1623
  %1722 = vmatpush1.msra.mxu0 %v1622
  %1723 = vmatprep.subr.mxu0 %v1619
  %1724 = vmatpush1.msra.mxu0 %v1618
  %1725 = vmatprep.subr.mxu0 %v1615
  %1726 = vmatpush1.msra.mxu0 %v1614
  %1727 = vmatprep.subr.mxu0 %v1611
  %1728 = vmatpush1.msra.mxu0 %v1610
  %1729 = vmatprep.subr.mxu0 0.0
  %1730 = vmatpush2.msra.mxu0 0.0
  %1731 = vmatprep.subr.mxu0 0.0
  %1732 = vmatpush2.msra.mxu0 0.0
  %1733 = vmatprep.subr.mxu0 0.0
  %1734 = vmatpush2.msra.mxu0 0.0
  %1735 = vmatprep.subr.mxu0 0.0
  %1736 = vmatpush2.msra.mxu0 0.0
  %1737 = vmatprep.subr.mxu0 0.0
  %1738 = vmatpush2.msra.mxu0 0.0
  %1739 = vmatprep.subr.mxu0 0.0
  %1740 = vmatpush2.msra.mxu0 0.0
  %1741 = vmatprep.subr.mxu0 0.0
  %1742 = vmatpush2.msra.mxu0 0.0
  %1743 = vmatprep.subr.mxu0 0.0
  %1744 = vmatpush2.msra.mxu0 0.0
  %1745 = vmatprep.subr.mxu0 0.0
  %1746 = vmatpush2.msra.mxu0 0.0
  %1747 = vmatprep.subr.mxu0 0.0
  %1748 = vmatpush2.msra.mxu0 0.0
  %1749 = vmatprep.subr.mxu0 0.0
  %1750 = vmatpush2.msra.mxu0 0.0
  %1751 = vmatprep.subr.mxu0 0.0
  %1752 = vmatpush2.msra.mxu0 0.0
  %1753 = vmatprep.subr.mxu0 0.0
  %1754 = vmatpush2.msra.mxu0 0.0
  %1755 = vmatprep.subr.mxu0 0.0
  %1756 = vmatpush2.msra.mxu0 0.0
  %1757 = vmatprep.subr.mxu0 0.0
  %1758 = vmatpush2.msra.mxu0 0.0
  %1759 = vmatprep.subr.mxu0 0.0
  %1760 = vmatpush2.msra.mxu0 0.0
  %1761 = vmatprep.mubr.f32.mxu0 0.0
  %1762 = vmatmul.mubr.f32.gmra.mxu0 %v1608
  %v1763 = vpop.f32.mrf.mxu0
  %v1764 = vadd.f32 %v1680, %v1763
  %v1765 = vpop.f32.mrf.mxu0
  %v1766 = vadd.f32 %v1684, %v1765
  %1767 = vdwg.mxu0
  %1768 = vmatprep.subr.mxu0 %v1673
  %1769 = vmatpush1.msra.mxu0 %v1672
  %1770 = vmatprep.subr.mxu0 %v1669
  %1771 = vmatpush1.msra.mxu0 %v1668
  %1772 = vmatprep.subr.mxu0 %v1665
  %1773 = vmatpush1.msra.mxu0 %v1664
  %1774 = vmatprep.subr.mxu0 %v1661
  %1775 = vmatpush1.msra.mxu0 %v1660
  %1776 = vmatprep.subr.mxu0 %v1657
  %1777 = vmatpush1.msra.mxu0 %v1656
  %1778 = vmatprep.subr.mxu0 %v1653
  %1779 = vmatpush1.msra.mxu0 %v1652
  %1780 = vmatprep.subr.mxu0 %v1649
  %1781 = vmatpush1.msra.mxu0 %v1648
  %1782 = vmatprep.subr.mxu0 %v1645
  %1783 = vmatpush1.msra.mxu0 %v1644
  %1784 = vmatprep.subr.mxu0 %v1641
  %1785 = vmatpush1.msra.mxu0 %v1640
  %1786 = vmatprep.subr.mxu0 %v1637
  %1787 = vmatpush1.msra.mxu0 %v1636
  %1788 = vmatprep.subr.mxu0 %v1633
  %1789 = vmatpush1.msra.mxu0 %v1632
  %1790 = vmatprep.subr.mxu0 %v1629
  %1791 = vmatpush1.msra.mxu0 %v1628
  %1792 = vmatprep.subr.mxu0 %v1625
  %1793 = vmatpush1.msra.mxu0 %v1624
  %1794 = vmatprep.subr.mxu0 %v1621
  %1795 = vmatpush1.msra.mxu0 %v1620
  %1796 = vmatprep.subr.mxu0 %v1617
  %1797 = vmatpush1.msra.mxu0 %v1616
  %1798 = vmatprep.subr.mxu0 %v1613
  %1799 = vmatpush1.msra.mxu0 %v1612
  %1800 = vmatprep.subr.mxu0 0.0
  %1801 = vmatpush2.msra.mxu0 0.0
  %1802 = vmatprep.subr.mxu0 0.0
  %1803 = vmatpush2.msra.mxu0 0.0
  %1804 = vmatprep.subr.mxu0 0.0
  %1805 = vmatpush2.msra.mxu0 0.0
  %1806 = vmatprep.subr.mxu0 0.0
  %1807 = vmatpush2.msra.mxu0 0.0
  %1808 = vmatprep.subr.mxu0 0.0
  %1809 = vmatpush2.msra.mxu0 0.0
  %1810 = vmatprep.subr.mxu0 0.0
  %1811 = vmatpush2.msra.mxu0 0.0
  %1812 = vmatprep.subr.mxu0 0.0
  %1813 = vmatpush2.msra.mxu0 0.0
  %1814 = vmatprep.subr.mxu0 0.0
  %1815 = vmatpush2.msra.mxu0 0.0
  %1816 = vmatprep.subr.mxu0 0.0
  %1817 = vmatpush2.msra.mxu0 0.0
  %1818 = vmatprep.subr.mxu0 0.0
  %1819 = vmatpush2.msra.mxu0 0.0
  %1820 = vmatprep.subr.mxu0 0.0
  %1821 = vmatpush2.msra.mxu0 0.0
  %1822 = vmatprep.subr.mxu0 0.0
  %1823 = vmatpush2.msra.mxu0 0.0
  %1824 = vmatprep.subr.mxu0 0.0
  %1825 = vmatpush2.msra.mxu0 0.0
  %1826 = vmatprep.subr.mxu0 0.0
  %1827 = vmatpush2.msra.mxu0 0.0
  %1828 = vmatprep.subr.mxu0 0.0
  %1829 = vmatpush2.msra.mxu0 0.0
  %1830 = vmatprep.subr.mxu0 0.0
  %1831 = vmatpush2.msra.mxu0 0.0
  %1832 = vmatprep.mubr.f32.mxu0 0.0
  %1833 = vmatmul.mubr.f32.gmra.mxu0 %v1608
  %v1834 = vpop.f32.mrf.mxu0
  %v1835 = vadd.f32 %v1688, %v1834
  %v1836 = vpop.f32.mrf.mxu0
  %v1837 = vadd.f32 %v1692, %v1836
  %1838 = vdwg.mxu0
  %v1839 = vxor.u32 %v1764, 2147483648
  %v1840 = vmul.f32 %v1839, 1.442695
  %v1841 = vpow.pop %v1840
  %v1842 = vadd.f32 %v1841, 1.0
  %v1843 = vrcp.pop %v1842
  %v1844 = vmul.f32 1.0, %v1843
  %v1845 = vxor.u32 %v1766, 2147483648
  %v1846 = vmul.f32 %v1845, 1.442695
  %v1847 = vpow.pop %v1846
  %v1848 = vadd.f32 %v1847, 1.0
  %v1849 = vrcp.pop %v1848
  %v1850 = vmul.f32 1.0, %v1849
  %v1851 = vtanh.pop %v1835
  %v1852 = vxor.u32 %v1837, 2147483648
  %v1853 = vmul.f32 %v1852, 1.442695
  %v1854 = vpow.pop %v1853
  %v1855 = vadd.f32 %v1854, 1.0
  %v1856 = vrcp.pop %v1855
  %v1857 = vmul.f32 1.0, %v1856
  %v1858 = vmul.f32 %v1850, %v1606
  %v1859 = vmul.f32 %v1844, %v1851
  %v1860 = vadd.f32 %v1858, %v1859
  %v1861 = vtanh.pop %v1860
  %v1862 = vmul.f32 %v1857, %v1861
  %1863 = vst [vmem:[#allocation3 + $0x6] sm:$0x1] %v1862
  %v1864 = vld [vmem:[%s3] sm:$0xff]
  %v1865 = vld [vmem:[%s3 + $0x8] sm:$0xff]
  %v1866 = vld [vmem:[%s3 + $0x10] sm:$0xff]
  %v1867 = vld [vmem:[%s3 + $0x18] sm:$0xff]
  %v1868 = vld [vmem:[%s3 + $0x20] sm:$0xff]
  %v1869 = vld [vmem:[%s3 + $0x28] sm:$0xff]
  %v1870 = vld [vmem:[%s3 + $0x30] sm:$0xff]
  %v1871 = vld [vmem:[%s3 + $0x38] sm:$0xff]
  %v1872 = vld [vmem:[%s3 + $0x40] sm:$0xff]
  %v1873 = vld [vmem:[%s3 + $0x48] sm:$0xff]
  %v1874 = vld [vmem:[%s3 + $0x50] sm:$0xff]
  %v1875 = vld [vmem:[%s3 + $0x58] sm:$0xff]
  %v1876 = vld [vmem:[%s3 + $0x60] sm:$0xff]
  %v1877 = vld [vmem:[%s3 + $0x68] sm:$0xff]
  %v1878 = vld [vmem:[%s3 + $0x70] sm:$0xff]
  %v1879 = vld [vmem:[%s3 + $0x78] sm:$0xff]
  %v1880 = vld [vmem:[%s3 + $0x80] sm:$0xff]
  %v1881 = vld [vmem:[%s3 + $0x88] sm:$0xff]
  %v1882 = vld [vmem:[%s3 + $0x90] sm:$0xff]
  %v1883 = vld [vmem:[%s3 + $0x98] sm:$0xff]
  %v1884 = vld [vmem:[%s3 + $0xa0] sm:$0xff]
  %v1885 = vld [vmem:[%s3 + $0xa8] sm:$0xff]
  %v1886 = vld [vmem:[%s3 + $0xb0] sm:$0xff]
  %v1887 = vld [vmem:[%s3 + $0xb8] sm:$0xff]
  %v1888 = vld [vmem:[%s3 + $0xc0] sm:$0xff]
  %v1889 = vld [vmem:[%s3 + $0xc8] sm:$0xff]
  %v1890 = vld [vmem:[%s3 + $0xd0] sm:$0xff]
  %v1891 = vld [vmem:[%s3 + $0xd8] sm:$0xff]
  %v1892 = vld [vmem:[%s3 + $0xe0] sm:$0xff]
  %v1893 = vld [vmem:[%s3 + $0xe8] sm:$0xff]
  %v1894 = vld [vmem:[%s3 + $0xf0] sm:$0xff]
  %v1895 = vld [vmem:[%s3 + $0xf8] sm:$0xff]
  %v1896 = vld [vmem:[%s3 + $0x100] sm:$0xff]
  %v1897 = vld [vmem:[%s3 + $0x108] sm:$0xff]
  %v1898 = vld [vmem:[%s3 + $0x110] sm:$0xff]
  %v1899 = vld [vmem:[%s3 + $0x118] sm:$0xff]
  %v1900 = vld [vmem:[%s3 + $0x120] sm:$0xff]
  %v1901 = vld [vmem:[%s3 + $0x128] sm:$0xff]
  %v1902 = vld [vmem:[%s3 + $0x130] sm:$0xff]
  %v1903 = vld [vmem:[%s3 + $0x138] sm:$0xff]
  %v1904 = vld [vmem:[%s3 + $0x140] sm:$0xff]
  %v1905 = vld [vmem:[%s3 + $0x148] sm:$0xff]
  %v1906 = vld [vmem:[%s3 + $0x150] sm:$0xff]
  %v1907 = vld [vmem:[%s3 + $0x158] sm:$0xff]
  %v1908 = vld [vmem:[%s3 + $0x160] sm:$0xff]
  %v1909 = vld [vmem:[%s3 + $0x168] sm:$0xff]
  %v1910 = vld [vmem:[%s3 + $0x170] sm:$0xff]
  %v1911 = vld [vmem:[%s3 + $0x178] sm:$0xff]
  %v1912 = vld [vmem:[%s3 + $0x180] sm:$0xff]
  %v1913 = vld [vmem:[%s3 + $0x188] sm:$0xff]
  %v1914 = vld [vmem:[%s3 + $0x190] sm:$0xff]
  %v1915 = vld [vmem:[%s3 + $0x198] sm:$0xff]
  %v1916 = vld [vmem:[%s3 + $0x1a0] sm:$0xff]
  %v1917 = vld [vmem:[%s3 + $0x1a8] sm:$0xff]
  %v1918 = vld [vmem:[%s3 + $0x1b0] sm:$0xff]
  %v1919 = vld [vmem:[%s3 + $0x1b8] sm:$0xff]
  %v1920 = vld [vmem:[%s3 + $0x1c0] sm:$0xff]
  %v1921 = vld [vmem:[%s3 + $0x1c8] sm:$0xff]
  %v1922 = vld [vmem:[%s3 + $0x1d0] sm:$0xff]
  %v1923 = vld [vmem:[%s3 + $0x1d8] sm:$0xff]
  %v1924 = vld [vmem:[%s3 + $0x1e0] sm:$0xff]
  %v1925 = vld [vmem:[%s3 + $0x1e8] sm:$0xff]
  %v1926 = vld [vmem:[%s3 + $0x1f0] sm:$0xff]
  %v1927 = vld [vmem:[%s3 + $0x1f8] sm:$0xff]
  %s1928 = scalar_lea.vmem [#allocation2], 7
  %v1929 = vld [vmem:[%s1928] ss:$8 sm:$0xf]
  %v1931 = vlaneseq
  %v1932 = vshrl.u32 %v1931, 7
  %v1933 = vsub.s32 0, %v1932
  %v1934 = vrot.slane %v1929, %v1933
  %v1935 = vlaneseq
  %v1936 = vshrl.u32 %v1935, 7
  %v1937 = vsub.s32 1, %v1936
  %v1938 = vrot.slane %v1929, %v1937
  %v1939 = vlaneseq
  %v1940 = vshrl.u32 %v1939, 7
  %v1941 = vsub.s32 2, %v1940
  %v1942 = vrot.slane %v1929, %v1941
  %v1943 = vlaneseq
  %v1944 = vshrl.u32 %v1943, 7
  %v1945 = vsub.s32 3, %v1944
  %v1946 = vrot.slane %v1929, %v1945
  %1951 = vmatprep.subr.mxu0 %v1925
  %1952 = vmatpush1.msra.mxu0 %v1924
  %1953 = vmatprep.subr.mxu0 %v1921
  %1954 = vmatpush1.msra.mxu0 %v1920
  %1955 = vmatprep.subr.mxu0 %v1917
  %1956 = vmatpush1.msra.mxu0 %v1916
  %1957 = vmatprep.subr.mxu0 %v1913
  %1958 = vmatpush1.msra.mxu0 %v1912
  %1959 = vmatprep.subr.mxu0 %v1909
  %1960 = vmatpush1.msra.mxu0 %v1908
  %1961 = vmatprep.subr.mxu0 %v1905
  %1962 = vmatpush1.msra.mxu0 %v1904
  %1963 = vmatprep.subr.mxu0 %v1901
  %1964 = vmatpush1.msra.mxu0 %v1900
  %1965 = vmatprep.subr.mxu0 %v1897
  %1966 = vmatpush1.msra.mxu0 %v1896
  %1967 = vmatprep.subr.mxu0 %v1893
  %1968 = vmatpush1.msra.mxu0 %v1892
  %1969 = vmatprep.subr.mxu0 %v1889
  %1970 = vmatpush1.msra.mxu0 %v1888
  %1971 = vmatprep.subr.mxu0 %v1885
  %1972 = vmatpush1.msra.mxu0 %v1884
  %1973 = vmatprep.subr.mxu0 %v1881
  %1974 = vmatpush1.msra.mxu0 %v1880
  %1975 = vmatprep.subr.mxu0 %v1877
  %1976 = vmatpush1.msra.mxu0 %v1876
  %1977 = vmatprep.subr.mxu0 %v1873
  %1978 = vmatpush1.msra.mxu0 %v1872
  %1979 = vmatprep.subr.mxu0 %v1869
  %1980 = vmatpush1.msra.mxu0 %v1868
  %1981 = vmatprep.subr.mxu0 %v1865
  %1982 = vmatpush1.msra.mxu0 %v1864
  %1983 = vmatprep.subr.mxu0 0.0
  %1984 = vmatpush2.msra.mxu0 0.0
  %1985 = vmatprep.subr.mxu0 0.0
  %1986 = vmatpush2.msra.mxu0 0.0
  %1987 = vmatprep.subr.mxu0 0.0
  %1988 = vmatpush2.msra.mxu0 0.0
  %1989 = vmatprep.subr.mxu0 0.0
  %1990 = vmatpush2.msra.mxu0 0.0
  %1991 = vmatprep.subr.mxu0 0.0
  %1992 = vmatpush2.msra.mxu0 0.0
  %1993 = vmatprep.subr.mxu0 0.0
  %1994 = vmatpush2.msra.mxu0 0.0
  %1995 = vmatprep.subr.mxu0 0.0
  %1996 = vmatpush2.msra.mxu0 0.0
  %1997 = vmatprep.subr.mxu0 0.0
  %1998 = vmatpush2.msra.mxu0 0.0
  %1999 = vmatprep.subr.mxu0 0.0
  %2000 = vmatpush2.msra.mxu0 0.0
  %2001 = vmatprep.subr.mxu0 0.0
  %2002 = vmatpush2.msra.mxu0 0.0
  %2003 = vmatprep.subr.mxu0 0.0
  %2004 = vmatpush2.msra.mxu0 0.0
  %2005 = vmatprep.subr.mxu0 0.0
  %2006 = vmatpush2.msra.mxu0 0.0
  %2007 = vmatprep.subr.mxu0 0.0
  %2008 = vmatpush2.msra.mxu0 0.0
  %2009 = vmatprep.subr.mxu0 0.0
  %2010 = vmatpush2.msra.mxu0 0.0
  %2011 = vmatprep.subr.mxu0 0.0
  %2012 = vmatpush2.msra.mxu0 0.0
  %2013 = vmatprep.subr.mxu0 0.0
  %2014 = vmatpush2.msra.mxu0 0.0
  %2015 = vmatprep.mubr.f32.mxu0 0.0
  %2016 = vmatmul.mubr.f32.gmra.mxu0 %v1862
  %v2017 = vpop.f32.mrf.mxu0
  %v2018 = vadd.f32 %v1934, %v2017
  %v2019 = vpop.f32.mrf.mxu0
  %v2020 = vadd.f32 %v1938, %v2019
  %2021 = vdwg.mxu0
  %2022 = vmatprep.subr.mxu0 %v1927
  %2023 = vmatpush1.msra.mxu0 %v1926
  %2024 = vmatprep.subr.mxu0 %v1923
  %2025 = vmatpush1.msra.mxu0 %v1922
  %2026 = vmatprep.subr.mxu0 %v1919
  %2027 = vmatpush1.msra.mxu0 %v1918
  %2028 = vmatprep.subr.mxu0 %v1915
  %2029 = vmatpush1.msra.mxu0 %v1914
  %2030 = vmatprep.subr.mxu0 %v1911
  %2031 = vmatpush1.msra.mxu0 %v1910
  %2032 = vmatprep.subr.mxu0 %v1907
  %2033 = vmatpush1.msra.mxu0 %v1906
  %2034 = vmatprep.subr.mxu0 %v1903
  %2035 = vmatpush1.msra.mxu0 %v1902
  %2036 = vmatprep.subr.mxu0 %v1899
  %2037 = vmatpush1.msra.mxu0 %v1898
  %2038 = vmatprep.subr.mxu0 %v1895
  %2039 = vmatpush1.msra.mxu0 %v1894
  %2040 = vmatprep.subr.mxu0 %v1891
  %2041 = vmatpush1.msra.mxu0 %v1890
  %2042 = vmatprep.subr.mxu0 %v1887
  %2043 = vmatpush1.msra.mxu0 %v1886
  %2044 = vmatprep.subr.mxu0 %v1883
  %2045 = vmatpush1.msra.mxu0 %v1882
  %2046 = vmatprep.subr.mxu0 %v1879
  %2047 = vmatpush1.msra.mxu0 %v1878
  %2048 = vmatprep.subr.mxu0 %v1875
  %2049 = vmatpush1.msra.mxu0 %v1874
  %2050 = vmatprep.subr.mxu0 %v1871
  %2051 = vmatpush1.msra.mxu0 %v1870
  %2052 = vmatprep.subr.mxu0 %v1867
  %2053 = vmatpush1.msra.mxu0 %v1866
  %2054 = vmatprep.subr.mxu0 0.0
  %2055 = vmatpush2.msra.mxu0 0.0
  %2056 = vmatprep.subr.mxu0 0.0
  %2057 = vmatpush2.msra.mxu0 0.0
  %2058 = vmatprep.subr.mxu0 0.0
  %2059 = vmatpush2.msra.mxu0 0.0
  %2060 = vmatprep.subr.mxu0 0.0
  %2061 = vmatpush2.msra.mxu0 0.0
  %2062 = vmatprep.subr.mxu0 0.0
  %2063 = vmatpush2.msra.mxu0 0.0
  %2064 = vmatprep.subr.mxu0 0.0
  %2065 = vmatpush2.msra.mxu0 0.0
  %2066 = vmatprep.subr.mxu0 0.0
  %2067 = vmatpush2.msra.mxu0 0.0
  %2068 = vmatprep.subr.mxu0 0.0
  %2069 = vmatpush2.msra.mxu0 0.0
  %2070 = vmatprep.subr.mxu0 0.0
  %2071 = vmatpush2.msra.mxu0 0.0
  %2072 = vmatprep.subr.mxu0 0.0
  %2073 = vmatpush2.msra.mxu0 0.0
  %2074 = vmatprep.subr.mxu0 0.0
  %2075 = vmatpush2.msra.mxu0 0.0
  %2076 = vmatprep.subr.mxu0 0.0
  %2077 = vmatpush2.msra.mxu0 0.0
  %2078 = vmatprep.subr.mxu0 0.0
  %2079 = vmatpush2.msra.mxu0 0.0
  %2080 = vmatprep.subr.mxu0 0.0
  %2081 = vmatpush2.msra.mxu0 0.0
  %2082 = vmatprep.subr.mxu0 0.0
  %2083 = vmatpush2.msra.mxu0 0.0
  %2084 = vmatprep.subr.mxu0 0.0
  %2085 = vmatpush2.msra.mxu0 0.0
  %2086 = vmatprep.mubr.f32.mxu0 0.0
  %2087 = vmatmul.mubr.f32.gmra.mxu0 %v1862
  %v2088 = vpop.f32.mrf.mxu0
  %v2089 = vadd.f32 %v1942, %v2088
  %v2090 = vpop.f32.mrf.mxu0
  %v2091 = vadd.f32 %v1946, %v2090
  %2092 = vdwg.mxu0
  %v2093 = vxor.u32 %v2018, 2147483648
  %v2094 = vmul.f32 %v2093, 1.442695
  %v2095 = vpow.pop %v2094
  %v2096 = vadd.f32 %v2095, 1.0
  %v2097 = vrcp.pop %v2096
  %v2098 = vmul.f32 1.0, %v2097
  %v2099 = vxor.u32 %v2020, 2147483648
  %v2100 = vmul.f32 %v2099, 1.442695
  %v2101 = vpow.pop %v2100
  %v2102 = vadd.f32 %v2101, 1.0
  %v2103 = vrcp.pop %v2102
  %v2104 = vmul.f32 1.0, %v2103
  %v2105 = vtanh.pop %v2089
  %v2106 = vxor.u32 %v2091, 2147483648
  %v2107 = vmul.f32 %v2106, 1.442695
  %v2108 = vpow.pop %v2107
  %v2109 = vadd.f32 %v2108, 1.0
  %v2110 = vrcp.pop %v2109
  %v2111 = vmul.f32 1.0, %v2110
  %v2112 = vmul.f32 %v2104, %v1860
  %v2113 = vmul.f32 %v2098, %v2105
  %v2114 = vadd.f32 %v2112, %v2113
  %v2115 = vtanh.pop %v2114
  %v2116 = vmul.f32 %v2111, %v2115
  %2117 = vst [vmem:[#allocation3 + $0x7] sm:$0x1] %v2116
  %v2118 = vld [vmem:[#allocation3] sm:$0xff]
  %v2119 = vld [vmem:[%s4] sm:$0xff]
  %v2120 = vld [vmem:[%s4 + $0x8] sm:$0xff]
  %v2121 = vld [vmem:[%s4 + $0x10] sm:$0xff]
  %v2122 = vld [vmem:[%s4 + $0x18] sm:$0xff]
  %v2123 = vld [vmem:[%s4 + $0x20] sm:$0xff]
  %v2124 = vld [vmem:[%s4 + $0x28] sm:$0xff]
  %v2125 = vld [vmem:[%s4 + $0x30] sm:$0xff]
  %v2126 = vld [vmem:[%s4 + $0x38] sm:$0xff]
  %v2127 = vld [vmem:[%s4 + $0x40] sm:$0xff]
  %v2128 = vld [vmem:[%s4 + $0x48] sm:$0xff]
  %v2129 = vld [vmem:[%s4 + $0x50] sm:$0xff]
  %v2130 = vld [vmem:[%s4 + $0x58] sm:$0xff]
  %v2131 = vld [vmem:[%s4 + $0x60] sm:$0xff]
  %v2132 = vld [vmem:[%s4 + $0x68] sm:$0xff]
  %v2133 = vld [vmem:[%s4 + $0x70] sm:$0xff]
  %v2134 = vld [vmem:[%s4 + $0x78] sm:$0xff]
  %v2135 = vld [vmem:[#allocation4] sm:$0x1]
  %v2137 = vlaneseq
  %v2138 = vshrl.u32 %v2137, 7
  %v2139 = vsub.s32 0, %v2138
  %v2140 = vrot.slane %v2135, %v2139
  %2142 = vmatprep.subr.mxu0 0.0
  %2143 = vmatpush1.msra.mxu0 %v2134
  %2144 = vmatprep.subr.mxu0 0.0
  %2145 = vmatpush1.msra.mxu0 %v2133
  %2146 = vmatprep.subr.mxu0 0.0
  %2147 = vmatpush1.msra.mxu0 %v2132
  %2148 = vmatprep.subr.mxu0 0.0
  %2149 = vmatpush1.msra.mxu0 %v2131
  %2150 = vmatprep.subr.mxu0 0.0
  %2151 = vmatpush1.msra.mxu0 %v2130
  %2152 = vmatprep.subr.mxu0 0.0
  %2153 = vmatpush1.msra.mxu0 %v2129
  %2154 = vmatprep.subr.mxu0 0.0
  %2155 = vmatpush1.msra.mxu0 %v2128
  %2156 = vmatprep.subr.mxu0 0.0
  %2157 = vmatpush1.msra.mxu0 %v2127
  %2158 = vmatprep.subr.mxu0 0.0
  %2159 = vmatpush1.msra.mxu0 %v2126
  %2160 = vmatprep.subr.mxu0 0.0
  %2161 = vmatpush1.msra.mxu0 %v2125
  %2162 = vmatprep.subr.mxu0 0.0
  %2163 = vmatpush1.msra.mxu0 %v2124
  %2164 = vmatprep.subr.mxu0 0.0
  %2165 = vmatpush1.msra.mxu0 %v2123
  %2166 = vmatprep.subr.mxu0 0.0
  %2167 = vmatpush1.msra.mxu0 %v2122
  %2168 = vmatprep.subr.mxu0 0.0
  %2169 = vmatpush1.msra.mxu0 %v2121
  %2170 = vmatprep.subr.mxu0 0.0
  %2171 = vmatpush1.msra.mxu0 %v2120
  %2172 = vmatprep.subr.mxu0 0.0
  %2173 = vmatpush1.msra.mxu0 %v2119
  %2174 = vmatprep.subr.mxu0 0.0
  %2175 = vmatpush2.msra.mxu0 0.0
  %2176 = vmatprep.subr.mxu0 0.0
  %2177 = vmatpush2.msra.mxu0 0.0
  %2178 = vmatprep.subr.mxu0 0.0
  %2179 = vmatpush2.msra.mxu0 0.0
  %2180 = vmatprep.subr.mxu0 0.0
  %2181 = vmatpush2.msra.mxu0 0.0
  %2182 = vmatprep.subr.mxu0 0.0
  %2183 = vmatpush2.msra.mxu0 0.0
  %2184 = vmatprep.subr.mxu0 0.0
  %2185 = vmatpush2.msra.mxu0 0.0
  %2186 = vmatprep.subr.mxu0 0.0
  %2187 = vmatpush2.msra.mxu0 0.0
  %2188 = vmatprep.subr.mxu0 0.0
  %2189 = vmatpush2.msra.mxu0 0.0
  %2190 = vmatprep.subr.mxu0 0.0
  %2191 = vmatpush2.msra.mxu0 0.0
  %2192 = vmatprep.subr.mxu0 0.0
  %2193 = vmatpush2.msra.mxu0 0.0
  %2194 = vmatprep.subr.mxu0 0.0
  %2195 = vmatpush2.msra.mxu0 0.0
  %2196 = vmatprep.subr.mxu0 0.0
  %2197 = vmatpush2.msra.mxu0 0.0
  %2198 = vmatprep.subr.mxu0 0.0
  %2199 = vmatpush2.msra.mxu0 0.0
  %2200 = vmatprep.subr.mxu0 0.0
  %2201 = vmatpush2.msra.mxu0 0.0
  %2202 = vmatprep.subr.mxu0 0.0
  %2203 = vmatpush2.msra.mxu0 0.0
  %2204 = vmatprep.subr.mxu0 0.0
  %2205 = vmatpush2.msra.mxu0 0.0
  %2206 = vmatprep.mubr.f32.mxu0 0.0
  %2207 = vmatmul.mubr.f32.gmra.mxu0 %v2118
  %v2208 = vpop.f32.mrf.mxu0
  %v2209 = vadd.f32 %v2140, %v2208
  %v2210 = vpop.f32.mrf.mxu0
  %2211 = vdwg.mxu0
  %vm2212 = vcmask 7168
  %2213 = vst.msk [vmem:[%s6] sm:$0xff] %vm2212, %v2209
  // Predicated region
  $region26: #{lstm_forward_pallas.1} parent=0 // pred_check
    _
  $region27: #{lstm_forward_pallas.1} parent=0 // pred_check_branch
    %2215 = sbr.rel (0) target = $region29
  $region28: #{lstm_forward_pallas.1} parent=0 // pred_region
    _
  $region29: #{lstm_forward_pallas.1} parent=0 // pred_fallthru
    _
  // Predicated region
  $region30: #{lstm_forward_pallas.1} parent=0 // pred_check
    _
  $region31: #{lstm_forward_pallas.1} parent=0 // pred_check_branch
    %2217 = sbr.rel (0) target = $region33
  $region32: #{lstm_forward_pallas.1} parent=0 // pred_region
    _
  $region33: #{lstm_forward_pallas.1} parent=0 // pred_fallthru
    _

</llo_original>
